<compile_context>
chip_gen: v7x
topology: tpu7x:2x2x1
jax: 0.10.0
libtpu: 0.0.40
codegen_flags: <defaults>
</compile_context>

<pallas_src>
import functools

import jax
import jax.numpy as jnp
from jax.experimental import pallas as pl
from jax.experimental.pallas import tpu as pltpu


def _make_divisible(v, divisor, min_value=None):
    if min_value is None:
        min_value = divisor
    new_v = max(min_value, int(v + divisor / 2) // divisor * divisor)
    if new_v < 0.9 * v:
        new_v += divisor
    return new_v


def _hswish(x):
    return x * jnp.clip(x + 3.0, 0.0, 6.0) * (1.0 / 6.0)


def _hsigmoid(x):
    return jnp.clip(x + 3.0, 0.0, 6.0) * (1.0 / 6.0)


# ---------------------------------------------------------------------------
# Kernel: one grid step per image.  Input/output are lane-dense (H, W*C)
# slabs; 1x1 convs are MXU matmuls against block-diagonal (kron) weights;
# the depthwise KxK conv is K row-shift matmuls (MXU) x K lane rolls (XLU)
# x per-tap coefficient broadcast-multiplies (VPU); SE pool/broadcast is a
# sublane sum + tiny matmuls with CselT folded into the second SE FC.
# ---------------------------------------------------------------------------
def _ir_kernel(x_ref, w1_ref, b1_ref, s_ref, coef_ref, b2_ref,
               csel_ref, sew1_ref, seb1_ref, sew2_ref, seb2_ref,
               w2_ref, b3_ref, out_ref, *, K, W, Hid, identity):
    f32 = jnp.float32
    P = (K - 1) // 2
    N = W * Hid

    x = x_ref[...]                                               # (H, W*Cin)

    # --- 1x1 expansion (BN1 scale folded into w1) + BN1 shift + h_swish ----
    h1 = jnp.dot(x, w1_ref[...], preferred_element_type=f32) + b1_ref[...]
    h1 = _hswish(h1)                                             # (H, W*Hid)

    # --- depthwise KxK conv (stride 1, zero pad) ----------------------------
    s_all = s_ref[...].astype(f32)                               # (K, H, H)
    coef = coef_ref[...]                                         # (K*K, N)
    acc = None
    for dy in range(K):
        rows = jnp.dot(s_all[dy], h1, preferred_element_type=f32)   # H-shift
        for dx in range(K):
            shift = (-(dx - P) * Hid) % N
            shifted = pltpu.roll(rows, shift, axis=1) if shift else rows
            term = shifted * coef[dy * K + dx][None, :]
            acc = term if acc is None else acc + term
    h2 = acc + b2_ref[...]                                       # BN2 shift

    # --- Squeeze-and-Excite --------------------------------------------------
    col_sum = jnp.sum(h2, axis=0, keepdims=True)                 # (1, N)
    pooled = jnp.dot(col_sum, csel_ref[...].astype(f32),
                     preferred_element_type=f32)                 # (1, Hid)
    s1 = jnp.maximum(
        jnp.dot(pooled, sew1_ref[...], preferred_element_type=f32)
        + seb1_ref[...], 0.0)                                    # (1, mk)
    gate = _hsigmoid(
        jnp.dot(s1, sew2_ref[...], preferred_element_type=f32)
        + seb2_ref[...])                                         # (1, N)

    # --- h_swish, 1x1 projection (BN3 scale folded) + shift (+ residual) ----
    h3 = _hswish(h2 * gate)
    out = jnp.dot(h3, w2_ref[...], preferred_element_type=f32) + b3_ref[...]
    if identity:
        out = out + x
    out_ref[...] = out.astype(out_ref.dtype)


# ---------------------------------------------------------------------------
# Operator build: run ONCE per weight set / (H, W, K), outside the jitted
# forward.  Operators are independent of the batch size.
# ---------------------------------------------------------------------------
def prepare_operators(p, H, W, K):
    Cin, Hid = p['w1'].shape
    P = (K - 1) // 2
    f32 = jnp.float32
    bf16 = jnp.bfloat16
    eyeW = jnp.eye(W, dtype=f32)

    # 1x1 expansion: BN1 scale folded into block-diagonal weight.
    w1k = jnp.kron(eyeW, p['w1'].astype(f32) * p['bn1_s'])      # (W*Cin, W*Hid)
    b1w = jnp.tile(p['bn1_b'], (1, W))                          # (1, W*Hid)

    # Depthwise: per-dy row-shift selectors (exact 0/1 -> bf16) and per-(dy,dx)
    # lane coefficient rows (wdw * bn2_scale * W-boundary validity mask).
    r = jnp.arange(H)
    S_list = []
    for dy in range(K):
        src = r + (dy - P)
        ok = (src >= 0) & (src < H)
        S_list.append((ok[:, None]
                       & (jnp.arange(H)[None, :] == src[:, None])).astype(bf16))
    S = jnp.stack(S_list)                                       # (K, H, H)

    wdw = p['wdw'].reshape(K, K, Hid).astype(f32)
    w_idx = jnp.arange(W)
    coef_rows = []
    for dy in range(K):
        for dx in range(K):
            valid = (((w_idx + dx - P) >= 0)
                     & ((w_idx + dx - P) < W)).astype(f32)      # (W,)
            c = valid[:, None] * (wdw[dy, dx] * p['bn2_s'][0])[None, :]
            coef_rows.append(c.reshape(W * Hid))
    coef = jnp.stack(coef_rows)                                 # (K*K, W*Hid)
    b2w = jnp.tile(p['bn2_b'], (1, W))                          # (1, W*Hid)

    # SE: pooling selector (0 and 1/(H*W), both exact in bf16) and the second
    # SE FC with the per-pixel broadcast (CselT) folded in offline.
    csel = (jnp.tile(jnp.eye(Hid, dtype=f32), (W, 1)) / (H * W)).astype(bf16)
    sew2w = jnp.tile(p['se_w2'].astype(f32), (1, W))            # (mk, W*Hid)
    seb2w = jnp.tile(p['se_b2'].astype(f32), (1, W))            # (1, W*Hid)

    # 1x1 projection: BN3 scale folded in.
    w2k = jnp.kron(eyeW, p['w2'].astype(f32) * p['bn3_s'])      # (W*Hid, W*Oup)
    b3w = jnp.tile(p['bn3_b'], (1, W))                          # (1, W*Oup)

    return dict(w1k=w1k, b1w=b1w, S=S, coef=coef, b2w=b2w, csel=csel,
                se_w1=p['se_w1'].astype(f32), se_b1=p['se_b1'].astype(f32),
                sew2w=sew2w, seb2w=seb2w, w2k=w2k, b3w=b3w)


# ---------------------------------------------------------------------------
# Jittable forward: layout shuffle + one pallas_call with grid over batch.
# ---------------------------------------------------------------------------
def run_pallas(x_nchw, ops, *, K, identity):
    x_nchw = x_nchw.astype(jnp.float32)
    B, Cin, H, W = x_nchw.shape
    Hid = ops['csel'].shape[1]
    Oup = ops['w2k'].shape[1] // W

    # NCHW -> NHWC -> per-image lane-dense slab rows: (B*H, W*Cin)
    x_slab = jnp.transpose(x_nchw, (0, 2, 3, 1)).reshape(B * H, W * Cin)

    op_args = (ops['w1k'], ops['b1w'], ops['S'], ops['coef'], ops['b2w'],
               ops['csel'], ops['se_w1'], ops['se_b1'],
               ops['sew2w'], ops['seb2w'], ops['w2k'], ops['b3w'])

    def const_spec(a):
        nd = a.ndim
        # Constant block index across grid steps -> operator fetched once.
        return pl.BlockSpec(a.shape, lambda b, nd=nd: (0,) * nd)

    kernel = functools.partial(_ir_kernel, K=K, W=W, Hid=Hid,
                               identity=identity)
    out_slab = pl.pallas_call(
        kernel,
        out_shape=jax.ShapeDtypeStruct((B * H, W * Oup), jnp.float32),
        grid_spec=pltpu.PrefetchScalarGridSpec(
            num_scalar_prefetch=0,
            grid=(B,),                                  # one image per step
            in_specs=[pl.BlockSpec((H, W * Cin), lambda b: (b, 0))]
                     + [const_spec(a) for a in op_args],
            out_specs=pl.BlockSpec((H, W * Oup), lambda b: (b, 0))),
        compiler_params=pltpu.CompilerParams(
            dimension_semantics=("parallel",)),         # megacore on v7x
    )(x_slab, *op_args)

    # slab -> NHWC -> NCHW
    return out_slab.reshape(B, H, W, Oup).transpose(0, 3, 1, 2)


# ---------------------------------------------------------------------------
# Pure-JAX reference (eval-mode forward of the PyTorch module).
# ---------------------------------------------------------------------------
def reference(x_nchw, p, K, identity):
    x = jnp.transpose(x_nchw, (0, 2, 3, 1)).astype(jnp.float32)
    B, H, W, Cin = x.shape
    Hid = p['w1'].shape[1]
    P = (K - 1) // 2
    h = jnp.einsum('bhwc,cd->bhwd', x, p['w1'])
    h = h * p['bn1_s'] + p['bn1_b']
    h = _hswish(h)
    hp = jnp.pad(h, ((0, 0), (P, P), (P, P), (0, 0)))
    wdw = p['wdw'].reshape(K, K, Hid)
    acc = jnp.zeros_like(h)
    for dy in range(K):
        for dx in range(K):
            acc = acc + hp[:, dy:dy + H, dx:dx + W, :] * wdw[dy, dx]
    h = acc * p['bn2_s'] + p['bn2_b']
    pooled = jnp.mean(h, axis=(1, 2))
    s = jnp.maximum(pooled @ p['se_w1'] + p['se_b1'], 0.0)
    s = _hsigmoid(s @ p['se_w2'] + p['se_b2'])
    h = h * s[:, None, None, :]
    h = _hswish(h)
    out = jnp.einsum('bhwd,do->bhwo', h, p['w2'])
    out = out * p['bn3_s'] + p['bn3_b']
    if identity:
        out = out + x
    return jnp.transpose(out, (0, 3, 1, 2))


def _bn_fold(key, C):
    k1, k2, k3, k4 = jax.random.split(key, 4)
    gamma = jax.random.uniform(k1, (C,), minval=0.5, maxval=1.5)
    beta = jax.random.normal(k2, (C,)) * 0.1
    mean = jax.random.normal(k3, (C,)) * 0.1
    var = jax.random.uniform(k4, (C,), minval=0.5, maxval=1.5)
    scale = gamma / jnp.sqrt(var + 1e-5)
    shift = beta - mean * scale
    return (scale.reshape(1, C).astype(jnp.float32),
            shift.reshape(1, C).astype(jnp.float32))


if __name__ == "__main__":
    key = jax.random.PRNGKey(0)
    B, Cin, H, W = 2, 8, 16, 16
    Hid, Oup, K = 16, 8, 3          # inp != hidden_dim -> expansion branch
    stride = 1
    identity = (stride == 1 and Cin == Oup)
    mk = _make_divisible(Hid // 4, 8)

    keys = jax.random.split(key, 12)
    x = jax.random.normal(keys[0], (B, Cin, H, W), jnp.float32)

    p = {}
    p['w1'] = jax.random.normal(keys[1], (Cin, Hid), jnp.float32) * 0.3
    p['bn1_s'], p['bn1_b'] = _bn_fold(keys[2], Hid)
    p['wdw'] = jax.random.normal(keys[3], (K * K, Hid), jnp.float32) * 0.3
    p['bn2_s'], p['bn2_b'] = _bn_fold(keys[4], Hid)
    p['se_w1'] = jax.random.normal(keys[5], (Hid, mk), jnp.float32) * 0.3
    p['se_b1'] = jax.random.normal(keys[6], (1, mk), jnp.float32) * 0.1
    p['se_w2'] = jax.random.normal(keys[7], (mk, Hid), jnp.float32) * 0.3
    p['se_b2'] = jax.random.normal(keys[8], (1, Hid), jnp.float32) * 0.1
    p['w2'] = jax.random.normal(keys[9], (Hid, Oup), jnp.float32) * 0.3
    p['bn3_s'], p['bn3_b'] = _bn_fold(keys[10], Oup)

    # Operators are built ONCE, outside the per-call jitted hot path; they
    # must be rebuilt only if the weights or (H, W, K) change.
    ops = prepare_operators(p, H, W, K)
    ops = jax.tree_util.tree_map(jax.block_until_ready, ops)

    fwd = jax.jit(functools.partial(run_pallas, K=K, identity=identity))
    out = jax.block_until_ready(fwd(x, ops))

    ref = reference(x, p, K, identity)
    err = float(jnp.max(jnp.abs(out - ref)))
    assert jnp.allclose(out, ref, atol=1e-4, rtol=1e-4), f"max abs err {err}"
    print("KERNEL_OK")
</pallas_src>

<mosaic_0001>
module attributes {stable_mosaic.version = 11 : i64} {
  func.func @_ir_kernel(%arg0: i32, %arg1: memref<16x128xf32, #tpu.memory_space<vmem>>, %arg2: memref<128x256xf32, #tpu.memory_space<vmem>>, %arg3: memref<1x256xf32, #tpu.memory_space<vmem>>, %arg4: memref<3x16x16xbf16, #tpu.memory_space<vmem>>, %arg5: memref<9x256xf32, #tpu.memory_space<vmem>>, %arg6: memref<1x256xf32, #tpu.memory_space<vmem>>, %arg7: memref<256x16xbf16, #tpu.memory_space<vmem>>, %arg8: memref<16x8xf32, #tpu.memory_space<vmem>>, %arg9: memref<1x8xf32, #tpu.memory_space<vmem>>, %arg10: memref<8x256xf32, #tpu.memory_space<vmem>>, %arg11: memref<1x256xf32, #tpu.memory_space<vmem>>, %arg12: memref<256x128xf32, #tpu.memory_space<vmem>>, %arg13: memref<1x128xf32, #tpu.memory_space<vmem>>, %arg14: memref<16x128xf32, #tpu.memory_space<vmem>>) attributes {dimension_semantics = [#tpu.dimension_semantics<parallel>], iteration_bounds = array<i64: 2>, scalar_prefetch = 0 : i64, scratch_operands = 0 : i64, tpu.core_type = #tpu.core_type<tc>, window_params = [{transform_indices = @transform_0, window_bounds = array<i64: 16, 128>}, {pipeline_mode = #tpu.pipeline_mode<synchronous>, transform_indices = @transform_1, window_bounds = array<i64: 128, 256>}, {pipeline_mode = #tpu.pipeline_mode<synchronous>, transform_indices = @transform_2, window_bounds = array<i64: 1, 256>}, {pipeline_mode = #tpu.pipeline_mode<synchronous>, transform_indices = @transform_3, window_bounds = array<i64: 3, 16, 16>}, {pipeline_mode = #tpu.pipeline_mode<synchronous>, transform_indices = @transform_4, window_bounds = array<i64: 9, 256>}, {pipeline_mode = #tpu.pipeline_mode<synchronous>, transform_indices = @transform_5, window_bounds = array<i64: 1, 256>}, {pipeline_mode = #tpu.pipeline_mode<synchronous>, transform_indices = @transform_6, window_bounds = array<i64: 256, 16>}, {pipeline_mode = #tpu.pipeline_mode<synchronous>, transform_indices = @transform_7, window_bounds = array<i64: 16, 8>}, {pipeline_mode = #tpu.pipeline_mode<synchronous>, transform_indices = @transform_8, window_bounds = array<i64: 1, 8>}, {pipeline_mode = #tpu.pipeline_mode<synchronous>, transform_indices = @transform_9, window_bounds = array<i64: 8, 256>}, {pipeline_mode = #tpu.pipeline_mode<synchronous>, transform_indices = @transform_10, window_bounds = array<i64: 1, 256>}, {pipeline_mode = #tpu.pipeline_mode<synchronous>, transform_indices = @transform_11, window_bounds = array<i64: 256, 128>}, {pipeline_mode = #tpu.pipeline_mode<synchronous>, transform_indices = @transform_12, window_bounds = array<i64: 1, 128>}, {transform_indices = @transform_13, window_bounds = array<i64: 16, 128>}]} {
    %c0 = arith.constant 0 : index
    %c0_0 = arith.constant 0 : index
    %0 = vector.load %arg1[%c0, %c0_0] : memref<16x128xf32, #tpu.memory_space<vmem>>, vector<16x128xf32>
    %c0_1 = arith.constant 0 : index
    %c0_2 = arith.constant 0 : index
    %1 = vector.load %arg2[%c0_1, %c0_2] : memref<128x256xf32, #tpu.memory_space<vmem>>, vector<128x256xf32>
    %cst = arith.constant dense<0.000000e+00> : vector<16x256xf32>
    %2 = tpu.matmul %0, %1, %cst {dimension_numbers = #tpu.dot_dimension_numbers<[1], [0], [0], [1], [0, 0, 1, 1], [], []>} : vector<16x128xf32>, vector<128x256xf32>, vector<16x256xf32> -> vector<16x256xf32>
    %c0_3 = arith.constant 0 : index
    %c0_4 = arith.constant 0 : index
    %3 = vector.load %arg3[%c0_3, %c0_4] : memref<1x256xf32, #tpu.memory_space<vmem>>, vector<1x256xf32>
    %4 = vector.broadcast %3 : vector<1x256xf32> to vector<16x256xf32>
    %5 = arith.addf %2, %4 : vector<16x256xf32>
    %cst_5 = arith.constant 3.000000e+00 : f32
    %6 = vector.broadcast %cst_5 : f32 to vector<16x256xf32>
    %7 = arith.addf %5, %6 : vector<16x256xf32>
    %cst_6 = arith.constant 0.000000e+00 : f32
    %cst_7 = arith.constant 6.000000e+00 : f32
    %8 = vector.broadcast %cst_6 : f32 to vector<16x256xf32>
    %9 = arith.maximumf %8, %7 : vector<16x256xf32>
    %10 = vector.broadcast %cst_7 : f32 to vector<16x256xf32>
    %11 = arith.minimumf %10, %9 : vector<16x256xf32>
    %12 = arith.mulf %5, %11 : vector<16x256xf32>
    %cst_8 = arith.constant 0.166666672 : f32
    %13 = vector.broadcast %cst_8 : f32 to vector<16x256xf32>
    %14 = arith.mulf %12, %13 : vector<16x256xf32>
    %c0_9 = arith.constant 0 : index
    %c0_10 = arith.constant 0 : index
    %c0_11 = arith.constant 0 : index
    %15 = vector.load %arg4[%c0_9, %c0_10, %c0_11] : memref<3x16x16xbf16, #tpu.memory_space<vmem>>, vector<3x16x16xbf16>
    %16 = arith.extf %15 : vector<3x16x16xbf16> to vector<3x16x16xf32>
    %c0_12 = arith.constant 0 : index
    %c0_13 = arith.constant 0 : index
    %17 = vector.load %arg5[%c0_12, %c0_13] : memref<9x256xf32, #tpu.memory_space<vmem>>, vector<9x256xf32>
    %18 = vector.extract_strided_slice %16 {offsets = [0, 0, 0], sizes = [1, 16, 16], strides = [1, 1, 1]} : vector<3x16x16xf32> to vector<1x16x16xf32>
    %19 = vector.shape_cast %18 : vector<1x16x16xf32> to vector<16x16xf32>
    %cst_14 = arith.constant dense<0.000000e+00> : vector<16x256xf32>
    %20 = tpu.matmul %19, %14, %cst_14 {dimension_numbers = #tpu.dot_dimension_numbers<[1], [0], [0], [1], [0, 0, 1, 1], [], []>} : vector<16x16xf32>, vector<16x256xf32>, vector<16x256xf32> -> vector<16x256xf32>
    %c16_i32 = arith.constant 16 : i32
    %21 = tpu.dynamic_rotate %20 by %c16_i32 dim 1 : vector<16x256xf32>, i32 -> vector<16x256xf32>
    %22 = vector.extract_strided_slice %17 {offsets = [0, 0], sizes = [1, 256], strides = [1, 1]} : vector<9x256xf32> to vector<1x256xf32>
    %23 = vector.shape_cast %22 : vector<1x256xf32> to vector<256xf32>
    %24 = vector.shape_cast %23 : vector<256xf32> to vector<1x256xf32>
    %25 = vector.broadcast %24 : vector<1x256xf32> to vector<16x256xf32>
    %26 = arith.mulf %21, %25 : vector<16x256xf32>
    %27 = vector.extract_strided_slice %17 {offsets = [1, 0], sizes = [1, 256], strides = [1, 1]} : vector<9x256xf32> to vector<1x256xf32>
    %28 = vector.shape_cast %27 : vector<1x256xf32> to vector<256xf32>
    %29 = vector.shape_cast %28 : vector<256xf32> to vector<1x256xf32>
    %30 = vector.broadcast %29 : vector<1x256xf32> to vector<16x256xf32>
    %31 = arith.mulf %20, %30 : vector<16x256xf32>
    %32 = arith.addf %26, %31 : vector<16x256xf32>
    %c240_i32 = arith.constant 240 : i32
    %33 = tpu.dynamic_rotate %20 by %c240_i32 dim 1 : vector<16x256xf32>, i32 -> vector<16x256xf32>
    %34 = vector.extract_strided_slice %17 {offsets = [2, 0], sizes = [1, 256], strides = [1, 1]} : vector<9x256xf32> to vector<1x256xf32>
    %35 = vector.shape_cast %34 : vector<1x256xf32> to vector<256xf32>
    %36 = vector.shape_cast %35 : vector<256xf32> to vector<1x256xf32>
    %37 = vector.broadcast %36 : vector<1x256xf32> to vector<16x256xf32>
    %38 = arith.mulf %33, %37 : vector<16x256xf32>
    %39 = arith.addf %32, %38 : vector<16x256xf32>
    %40 = vector.extract_strided_slice %16 {offsets = [1, 0, 0], sizes = [1, 16, 16], strides = [1, 1, 1]} : vector<3x16x16xf32> to vector<1x16x16xf32>
    %41 = vector.shape_cast %40 : vector<1x16x16xf32> to vector<16x16xf32>
    %cst_15 = arith.constant dense<0.000000e+00> : vector<16x256xf32>
    %42 = tpu.matmul %41, %14, %cst_15 {dimension_numbers = #tpu.dot_dimension_numbers<[1], [0], [0], [1], [0, 0, 1, 1], [], []>} : vector<16x16xf32>, vector<16x256xf32>, vector<16x256xf32> -> vector<16x256xf32>
    %c16_i32_16 = arith.constant 16 : i32
    %43 = tpu.dynamic_rotate %42 by %c16_i32_16 dim 1 : vector<16x256xf32>, i32 -> vector<16x256xf32>
    %44 = vector.extract_strided_slice %17 {offsets = [3, 0], sizes = [1, 256], strides = [1, 1]} : vector<9x256xf32> to vector<1x256xf32>
    %45 = vector.shape_cast %44 : vector<1x256xf32> to vector<256xf32>
    %46 = vector.shape_cast %45 : vector<256xf32> to vector<1x256xf32>
    %47 = vector.broadcast %46 : vector<1x256xf32> to vector<16x256xf32>
    %48 = arith.mulf %43, %47 : vector<16x256xf32>
    %49 = arith.addf %39, %48 : vector<16x256xf32>
    %50 = vector.extract_strided_slice %17 {offsets = [4, 0], sizes = [1, 256], strides = [1, 1]} : vector<9x256xf32> to vector<1x256xf32>
    %51 = vector.shape_cast %50 : vector<1x256xf32> to vector<256xf32>
    %52 = vector.shape_cast %51 : vector<256xf32> to vector<1x256xf32>
    %53 = vector.broadcast %52 : vector<1x256xf32> to vector<16x256xf32>
    %54 = arith.mulf %42, %53 : vector<16x256xf32>
    %55 = arith.addf %49, %54 : vector<16x256xf32>
    %c240_i32_17 = arith.constant 240 : i32
    %56 = tpu.dynamic_rotate %42 by %c240_i32_17 dim 1 : vector<16x256xf32>, i32 -> vector<16x256xf32>
    %57 = vector.extract_strided_slice %17 {offsets = [5, 0], sizes = [1, 256], strides = [1, 1]} : vector<9x256xf32> to vector<1x256xf32>
    %58 = vector.shape_cast %57 : vector<1x256xf32> to vector<256xf32>
    %59 = vector.shape_cast %58 : vector<256xf32> to vector<1x256xf32>
    %60 = vector.broadcast %59 : vector<1x256xf32> to vector<16x256xf32>
    %61 = arith.mulf %56, %60 : vector<16x256xf32>
    %62 = arith.addf %55, %61 : vector<16x256xf32>
    %63 = vector.extract_strided_slice %16 {offsets = [2, 0, 0], sizes = [1, 16, 16], strides = [1, 1, 1]} : vector<3x16x16xf32> to vector<1x16x16xf32>
    %64 = vector.shape_cast %63 : vector<1x16x16xf32> to vector<16x16xf32>
    %cst_18 = arith.constant dense<0.000000e+00> : vector<16x256xf32>
    %65 = tpu.matmul %64, %14, %cst_18 {dimension_numbers = #tpu.dot_dimension_numbers<[1], [0], [0], [1], [0, 0, 1, 1], [], []>} : vector<16x16xf32>, vector<16x256xf32>, vector<16x256xf32> -> vector<16x256xf32>
    %c16_i32_19 = arith.constant 16 : i32
    %66 = tpu.dynamic_rotate %65 by %c16_i32_19 dim 1 : vector<16x256xf32>, i32 -> vector<16x256xf32>
    %67 = vector.extract_strided_slice %17 {offsets = [6, 0], sizes = [1, 256], strides = [1, 1]} : vector<9x256xf32> to vector<1x256xf32>
    %68 = vector.shape_cast %67 : vector<1x256xf32> to vector<256xf32>
    %69 = vector.shape_cast %68 : vector<256xf32> to vector<1x256xf32>
    %70 = vector.broadcast %69 : vector<1x256xf32> to vector<16x256xf32>
    %71 = arith.mulf %66, %70 : vector<16x256xf32>
    %72 = arith.addf %62, %71 : vector<16x256xf32>
    %73 = vector.extract_strided_slice %17 {offsets = [7, 0], sizes = [1, 256], strides = [1, 1]} : vector<9x256xf32> to vector<1x256xf32>
    %74 = vector.shape_cast %73 : vector<1x256xf32> to vector<256xf32>
    %75 = vector.shape_cast %74 : vector<256xf32> to vector<1x256xf32>
    %76 = vector.broadcast %75 : vector<1x256xf32> to vector<16x256xf32>
    %77 = arith.mulf %65, %76 : vector<16x256xf32>
    %78 = arith.addf %72, %77 : vector<16x256xf32>
    %c240_i32_20 = arith.constant 240 : i32
    %79 = tpu.dynamic_rotate %65 by %c240_i32_20 dim 1 : vector<16x256xf32>, i32 -> vector<16x256xf32>
    %80 = vector.extract_strided_slice %17 {offsets = [8, 0], sizes = [1, 256], strides = [1, 1]} : vector<9x256xf32> to vector<1x256xf32>
    %81 = vector.shape_cast %80 : vector<1x256xf32> to vector<256xf32>
    %82 = vector.shape_cast %81 : vector<256xf32> to vector<1x256xf32>
    %83 = vector.broadcast %82 : vector<1x256xf32> to vector<16x256xf32>
    %84 = arith.mulf %79, %83 : vector<16x256xf32>
    %85 = arith.addf %78, %84 : vector<16x256xf32>
    %c0_21 = arith.constant 0 : index
    %c0_22 = arith.constant 0 : index
    %86 = vector.load %arg6[%c0_21, %c0_22] : memref<1x256xf32, #tpu.memory_space<vmem>>, vector<1x256xf32>
    %87 = vector.broadcast %86 : vector<1x256xf32> to vector<16x256xf32>
    %88 = arith.addf %85, %87 : vector<16x256xf32>
    %cst_23 = arith.constant dense<0.000000e+00> : vector<256xf32>
    %89 = vector.multi_reduction <add>, %88, %cst_23 [0] : vector<16x256xf32> to vector<256xf32>
    %90 = vector.shape_cast %89 : vector<256xf32> to vector<1x256xf32>
    %c0_24 = arith.constant 0 : index
    %c0_25 = arith.constant 0 : index
    %91 = vector.load %arg7[%c0_24, %c0_25] : memref<256x16xbf16, #tpu.memory_space<vmem>>, vector<256x16xbf16>
    %92 = arith.extf %91 : vector<256x16xbf16> to vector<256x16xf32>
    %cst_26 = arith.constant dense<0.000000e+00> : vector<1x16xf32>
    %93 = tpu.matmul %90, %92, %cst_26 {dimension_numbers = #tpu.dot_dimension_numbers<[1], [0], [0], [1], [0, 0, 1, 1], [], []>} : vector<1x256xf32>, vector<256x16xf32>, vector<1x16xf32> -> vector<1x16xf32>
    %c0_27 = arith.constant 0 : index
    %c0_28 = arith.constant 0 : index
    %94 = vector.load %arg8[%c0_27, %c0_28] : memref<16x8xf32, #tpu.memory_space<vmem>>, vector<16x8xf32>
    %cst_29 = arith.constant dense<0.000000e+00> : vector<1x8xf32>
    %95 = tpu.matmul %93, %94, %cst_29 {dimension_numbers = #tpu.dot_dimension_numbers<[1], [0], [0], [1], [0, 0, 1, 1], [], []>} : vector<1x16xf32>, vector<16x8xf32>, vector<1x8xf32> -> vector<1x8xf32>
    %c0_30 = arith.constant 0 : index
    %c0_31 = arith.constant 0 : index
    %96 = vector.load %arg9[%c0_30, %c0_31] : memref<1x8xf32, #tpu.memory_space<vmem>>, vector<1x8xf32>
    %97 = arith.addf %95, %96 : vector<1x8xf32>
    %cst_32 = arith.constant 0.000000e+00 : f32
    %98 = vector.broadcast %cst_32 : f32 to vector<1x8xf32>
    %99 = arith.maximumf %97, %98 : vector<1x8xf32>
    %c0_33 = arith.constant 0 : index
    %c0_34 = arith.constant 0 : index
    %100 = vector.load %arg10[%c0_33, %c0_34] : memref<8x256xf32, #tpu.memory_space<vmem>>, vector<8x256xf32>
    %cst_35 = arith.constant dense<0.000000e+00> : vector<1x256xf32>
    %101 = tpu.matmul %99, %100, %cst_35 {dimension_numbers = #tpu.dot_dimension_numbers<[1], [0], [0], [1], [0, 0, 1, 1], [], []>} : vector<1x8xf32>, vector<8x256xf32>, vector<1x256xf32> -> vector<1x256xf32>
    %c0_36 = arith.constant 0 : index
    %c0_37 = arith.constant 0 : index
    %102 = vector.load %arg11[%c0_36, %c0_37] : memref<1x256xf32, #tpu.memory_space<vmem>>, vector<1x256xf32>
    %103 = arith.addf %101, %102 : vector<1x256xf32>
    %cst_38 = arith.constant 3.000000e+00 : f32
    %104 = vector.broadcast %cst_38 : f32 to vector<1x256xf32>
    %105 = arith.addf %103, %104 : vector<1x256xf32>
    %cst_39 = arith.constant 0.000000e+00 : f32
    %cst_40 = arith.constant 6.000000e+00 : f32
    %106 = vector.broadcast %cst_39 : f32 to vector<1x256xf32>
    %107 = arith.maximumf %106, %105 : vector<1x256xf32>
    %108 = vector.broadcast %cst_40 : f32 to vector<1x256xf32>
    %109 = arith.minimumf %108, %107 : vector<1x256xf32>
    %cst_41 = arith.constant 0.166666672 : f32
    %110 = vector.broadcast %cst_41 : f32 to vector<1x256xf32>
    %111 = arith.mulf %109, %110 : vector<1x256xf32>
    %112 = vector.broadcast %111 : vector<1x256xf32> to vector<16x256xf32>
    %113 = arith.mulf %88, %112 : vector<16x256xf32>
    %cst_42 = arith.constant 3.000000e+00 : f32
    %114 = vector.broadcast %cst_42 : f32 to vector<16x256xf32>
    %115 = arith.addf %113, %114 : vector<16x256xf32>
    %cst_43 = arith.constant 0.000000e+00 : f32
    %cst_44 = arith.constant 6.000000e+00 : f32
    %116 = vector.broadcast %cst_43 : f32 to vector<16x256xf32>
    %117 = arith.maximumf %116, %115 : vector<16x256xf32>
    %118 = vector.broadcast %cst_44 : f32 to vector<16x256xf32>
    %119 = arith.minimumf %118, %117 : vector<16x256xf32>
    %120 = arith.mulf %113, %119 : vector<16x256xf32>
    %cst_45 = arith.constant 0.166666672 : f32
    %121 = vector.broadcast %cst_45 : f32 to vector<16x256xf32>
    %122 = arith.mulf %120, %121 : vector<16x256xf32>
    %c0_46 = arith.constant 0 : index
    %c0_47 = arith.constant 0 : index
    %123 = vector.load %arg12[%c0_46, %c0_47] : memref<256x128xf32, #tpu.memory_space<vmem>>, vector<256x128xf32>
    %cst_48 = arith.constant dense<0.000000e+00> : vector<16x128xf32>
    %124 = tpu.matmul %122, %123, %cst_48 {dimension_numbers = #tpu.dot_dimension_numbers<[1], [0], [0], [1], [0, 0, 1, 1], [], []>} : vector<16x256xf32>, vector<256x128xf32>, vector<16x128xf32> -> vector<16x128xf32>
    %c0_49 = arith.constant 0 : index
    %c0_50 = arith.constant 0 : index
    %125 = vector.load %arg13[%c0_49, %c0_50] : memref<1x128xf32, #tpu.memory_space<vmem>>, vector<1x128xf32>
    %126 = vector.broadcast %125 : vector<1x128xf32> to vector<16x128xf32>
    %127 = arith.addf %124, %126 : vector<16x128xf32>
    %128 = arith.addf %127, %0 : vector<16x128xf32>
    %c0_51 = arith.constant 0 : index
    %c0_52 = arith.constant 0 : index
    %129 = vector.load %arg14[%c0_51, %c0_52] : memref<16x128xf32, #tpu.memory_space<vmem>>, vector<16x128xf32>
    tpu.vector_store %arg14[%c0_51, %c0_52], %128 {strides = array<i32>} : memref<16x128xf32, #tpu.memory_space<vmem>>, vector<16x128xf32>,
    return
  }
  func.func @transform_0(%arg0: i32) -> (i32, i32) {
    %c0_i32 = arith.constant 0 : i32
    %c0_i32_0 = arith.constant 0 : i32
    return %arg0, %c0_i32 : i32, i32
  }
  func.func @transform_1(%arg0: i32) -> (i32, i32) {
    %c0_i32 = arith.constant 0 : i32
    %c0_i32_0 = arith.constant 0 : i32
    %c0_i32_1 = arith.constant 0 : i32
    return %c0_i32, %c0_i32_0 : i32, i32
  }
  func.func @transform_2(%arg0: i32) -> (i32, i32) {
    %c0_i32 = arith.constant 0 : i32
    %c0_i32_0 = arith.constant 0 : i32
    %c0_i32_1 = arith.constant 0 : i32
    return %c0_i32, %c0_i32_0 : i32, i32
  }
  func.func @transform_3(%arg0: i32) -> (i32, i32, i32) {
    %c0_i32 = arith.constant 0 : i32
    %c0_i32_0 = arith.constant 0 : i32
    %c0_i32_1 = arith.constant 0 : i32
    %c0_i32_2 = arith.constant 0 : i32
    return %c0_i32, %c0_i32_0, %c0_i32_1 : i32, i32, i32
  }
  func.func @transform_4(%arg0: i32) -> (i32, i32) {
    %c0_i32 = arith.constant 0 : i32
    %c0_i32_0 = arith.constant 0 : i32
    %c0_i32_1 = arith.constant 0 : i32
    return %c0_i32, %c0_i32_0 : i32, i32
  }
  func.func @transform_5(%arg0: i32) -> (i32, i32) {
    %c0_i32 = arith.constant 0 : i32
    %c0_i32_0 = arith.constant 0 : i32
    %c0_i32_1 = arith.constant 0 : i32
    return %c0_i32, %c0_i32_0 : i32, i32
  }
  func.func @transform_6(%arg0: i32) -> (i32, i32) {
    %c0_i32 = arith.constant 0 : i32
    %c0_i32_0 = arith.constant 0 : i32
    %c0_i32_1 = arith.constant 0 : i32
    return %c0_i32, %c0_i32_0 : i32, i32
  }
  func.func @transform_7(%arg0: i32) -> (i32, i32) {
    %c0_i32 = arith.constant 0 : i32
    %c0_i32_0 = arith.constant 0 : i32
    %c0_i32_1 = arith.constant 0 : i32
    return %c0_i32, %c0_i32_0 : i32, i32
  }
  func.func @transform_8(%arg0: i32) -> (i32, i32) {
    %c0_i32 = arith.constant 0 : i32
    %c0_i32_0 = arith.constant 0 : i32
    %c0_i32_1 = arith.constant 0 : i32
    return %c0_i32, %c0_i32_0 : i32, i32
  }
  func.func @transform_9(%arg0: i32) -> (i32, i32) {
    %c0_i32 = arith.constant 0 : i32
    %c0_i32_0 = arith.constant 0 : i32
    %c0_i32_1 = arith.constant 0 : i32
    return %c0_i32, %c0_i32_0 : i32, i32
  }
  func.func @transform_10(%arg0: i32) -> (i32, i32) {
    %c0_i32 = arith.constant 0 : i32
    %c0_i32_0 = arith.constant 0 : i32
    %c0_i32_1 = arith.constant 0 : i32
    return %c0_i32, %c0_i32_0 : i32, i32
  }
  func.func @transform_11(%arg0: i32) -> (i32, i32) {
    %c0_i32 = arith.constant 0 : i32
    %c0_i32_0 = arith.constant 0 : i32
    %c0_i32_1 = arith.constant 0 : i32
    return %c0_i32, %c0_i32_0 : i32, i32
  }
  func.func @transform_12(%arg0: i32) -> (i32, i32) {
    %c0_i32 = arith.constant 0 : i32
    %c0_i32_0 = arith.constant 0 : i32
    %c0_i32_1 = arith.constant 0 : i32
    return %c0_i32, %c0_i32_0 : i32, i32
  }
  func.func @transform_13(%arg0: i32) -> (i32, i32) {
    %c0_i32 = arith.constant 0 : i32
    %c0_i32_0 = arith.constant 0 : i32
    return %arg0, %c0_i32 : i32, i32
  }
}

</mosaic_0001>

<llo_original>
// kernel: run_pallas.1
$region0: #{run_pallas.1}
  #allocation0 [shape = 'u32[]', space=smem, size = 0x4, offset = 0x4, fixed_abs, tag = 'smem constant byte address 0x4 - core index']
  #allocation1 [shape = 'u32[144,128]{1,0:T(1,128)}', space=vmem, size = 0x12000, scoped, tag = 'internal scratch']
  %s0 = inlined_call_operand.vmem [shape: f32[32,128], index: 0, kind: input, shape index: {}]
  %s1 = inlined_call_operand.vmem [shape: f32[128,256], index: 1, kind: input, shape index: {}]
  %s2 = inlined_call_operand.vmem [shape: f32[1,256], index: 2, kind: input, shape index: {}]
  %s3 = inlined_call_operand.vmem [shape: bf16[3,16,16], index: 3, kind: input, shape index: {}]
  %s4 = inlined_call_operand.vmem [shape: f32[9,256], index: 4, kind: input, shape index: {}]
  %s5 = inlined_call_operand.vmem [shape: f32[1,256], index: 5, kind: input, shape index: {}]
  %s6 = inlined_call_operand.vmem [shape: bf16[256,16], index: 6, kind: input, shape index: {}]
  %s7 = inlined_call_operand.vmem [shape: f32[16,8], index: 7, kind: input, shape index: {}]
  %s8 = inlined_call_operand.vmem [shape: f32[1,8], index: 8, kind: input, shape index: {}]
  %s9 = inlined_call_operand.vmem [shape: f32[8,256], index: 9, kind: input, shape index: {}]
  %s10 = inlined_call_operand.vmem [shape: f32[1,256], index: 10, kind: input, shape index: {}]
  %s11 = inlined_call_operand.vmem [shape: f32[256,128], index: 11, kind: input, shape index: {}]
  %s12 = inlined_call_operand.vmem [shape: f32[1,128], index: 12, kind: input, shape index: {}]
  %s13 = inlined_call_operand.vmem [shape: f32[32,128], index: 13, kind: output, shape index: {}]
  %s14 = sld [smem:[#allocation0]]
  $region85: #{run_pallas.1} parent=0
    _
  %s16 = ssub.s32 1, %s14
  %s17 = scalar_select 0, %s16, %s14
  loop: start=0, step=1, limit=4
  $region2: #{run_pallas.1} parent=0 // loop_pre_header
    _
  $region3: #{run_pallas.1} parent=0 // loop_header
    %s19 = sphi 0, %s23
    %p20 = scmp.ge.s32.totalorder %s19, 4
    %s29 = sphi 0, %s31
    %s32 = sphi 0, %s29
    %s33 = sphi 0, %s32
    %s49 = sphi 0, %s33
    %s53 = sphi 0, %s53
    %s55 = sphi 0, %s53
    %s56 = sphi 0, %s55
    %s70 = sphi 0, %s56
    %s74 = sphi 0, %s74
    %s76 = sphi 0, %s74
    %s77 = sphi 0, %s76
    %s91 = sphi 0, %s77
    %s95 = sphi 0, %s95
    %s97 = sphi 0, %s95
    %s98 = sphi 0, %s97
    %s112 = sphi 0, %s98
    %s116 = sphi 0, %s116
    %s118 = sphi 0, %s116
    %s119 = sphi 0, %s118
    %s133 = sphi 0, %s119
    %s137 = sphi 0, %s137
    %s139 = sphi 0, %s137
    %s140 = sphi 0, %s139
    %s154 = sphi 0, %s140
    %s158 = sphi 0, %s158
    %s160 = sphi 0, %s158
    %s161 = sphi 0, %s160
    %s175 = sphi 0, %s161
    %s179 = sphi 0, %s179
    %s181 = sphi 0, %s179
    %s182 = sphi 0, %s181
    %s196 = sphi 0, %s182
    %s200 = sphi 0, %s200
    %s202 = sphi 0, %s200
    %s203 = sphi 0, %s202
    %s217 = sphi 0, %s203
    %s221 = sphi 0, %s221
    %s223 = sphi 0, %s221
    %s224 = sphi 0, %s223
    %s238 = sphi 0, %s224
    %s242 = sphi 0, %s242
    %s244 = sphi 0, %s242
    %s245 = sphi 0, %s244
    %s259 = sphi 0, %s245
    %s263 = sphi 0, %s263
    %s265 = sphi 0, %s263
    %s266 = sphi 0, %s265
    %s280 = sphi 0, %s266
    %s284 = sphi 0, %s284
    %s286 = sphi 0, %s284
    %s287 = sphi 0, %s286
    %s301 = sphi 0, %s287
    %s307 = sphi 0, %s309
    %s310 = sphi 0, %s307
    %s311 = sphi 0, %s310
    %s327 = sphi 0, %s311
  $region4: #{run_pallas.1} parent=0 // loop_header_branch
    %22 = sbr.rel (%p20) target = $region8
  $region5: #{run_pallas.1} parent=0 // loop_body
    %s24 = ssub.s32 %s19, 1
    %s25 = ssub.s32 %s19, 2
    %s26 = sadd.s32 %s19, 1
    %s27 = ssub.s32 %s19, %s26
    %p28 = scmp.eq.s32.totalorder %s27, 0
    %s30 = sadd.s32 %s29, 1
    %s31 = scalar_select %p28, %s29, %s30
    %p34 = pneg %p28
    %p35 = scmp.eq.s32.totalorder %s19, 1
    %p36 = por %p34, %p35
    %p37 = scmp.ne.s32.totalorder %s29, %s32
    %p38 = scmp.eq.s32.totalorder %s19, 0
    %p39 = por %p37, %p38
    %p40 = scmp.ne.s32.totalorder %s29, %s32
    %p41 = scmp.eq.s32.totalorder %s24, 1
    %p42 = por %p40, %p41
    %p43 = scmp.ne.s32.totalorder %s32, %s33
    %p44 = scmp.eq.s32.totalorder %s24, 0
    %p45 = por %p43, %p44
    %p46 = scmp.ne.s32.totalorder %s32, %s33
    %p47 = scmp.eq.s32.totalorder %s25, 1
    %p48 = por %p46, %p47
    %p50 = scmp.ne.s32.totalorder %s33, %s49
    %p51 = scmp.eq.s32.totalorder %s25, 0
    %p52 = por %p50, %p51
    %s54 = sadd.s32 %s53, 1
    %p57 = scmp.eq.s32.totalorder %s19, 1
    %p58 = scmp.ne.s32.totalorder %s53, %s55
    %p59 = scmp.eq.s32.totalorder %s19, 0
    %p60 = por %p58, %p59
    %p61 = scmp.ne.s32.totalorder %s53, %s55
    %p62 = scmp.eq.s32.totalorder %s24, 1
    %p63 = por %p61, %p62
    %p64 = scmp.ne.s32.totalorder %s55, %s56
    %p65 = scmp.eq.s32.totalorder %s24, 0
    %p66 = por %p64, %p65
    %p67 = scmp.ne.s32.totalorder %s55, %s56
    %p68 = scmp.eq.s32.totalorder %s25, 1
    %p69 = por %p67, %p68
    %p71 = scmp.ne.s32.totalorder %s56, %s70
    %p72 = scmp.eq.s32.totalorder %s25, 0
    %p73 = por %p71, %p72
    %s75 = sadd.s32 %s74, 1
    %p78 = scmp.eq.s32.totalorder %s19, 1
    %p79 = scmp.ne.s32.totalorder %s74, %s76
    %p80 = scmp.eq.s32.totalorder %s19, 0
    %p81 = por %p79, %p80
    %p82 = scmp.ne.s32.totalorder %s74, %s76
    %p83 = scmp.eq.s32.totalorder %s24, 1
    %p84 = por %p82, %p83
    %p85 = scmp.ne.s32.totalorder %s76, %s77
    %p86 = scmp.eq.s32.totalorder %s24, 0
    %p87 = por %p85, %p86
    %p88 = scmp.ne.s32.totalorder %s76, %s77
    %p89 = scmp.eq.s32.totalorder %s25, 1
    %p90 = por %p88, %p89
    %p92 = scmp.ne.s32.totalorder %s77, %s91
    %p93 = scmp.eq.s32.totalorder %s25, 0
    %p94 = por %p92, %p93
    %s96 = sadd.s32 %s95, 1
    %p99 = scmp.eq.s32.totalorder %s19, 1
    %p100 = scmp.ne.s32.totalorder %s95, %s97
    %p101 = scmp.eq.s32.totalorder %s19, 0
    %p102 = por %p100, %p101
    %p103 = scmp.ne.s32.totalorder %s95, %s97
    %p104 = scmp.eq.s32.totalorder %s24, 1
    %p105 = por %p103, %p104
    %p106 = scmp.ne.s32.totalorder %s97, %s98
    %p107 = scmp.eq.s32.totalorder %s24, 0
    %p108 = por %p106, %p107
    %p109 = scmp.ne.s32.totalorder %s97, %s98
    %p110 = scmp.eq.s32.totalorder %s25, 1
    %p111 = por %p109, %p110
    %p113 = scmp.ne.s32.totalorder %s98, %s112
    %p114 = scmp.eq.s32.totalorder %s25, 0
    %p115 = por %p113, %p114
    %s117 = sadd.s32 %s116, 1
    %p120 = scmp.eq.s32.totalorder %s19, 1
    %p121 = scmp.ne.s32.totalorder %s116, %s118
    %p122 = scmp.eq.s32.totalorder %s19, 0
    %p123 = por %p121, %p122
    %p124 = scmp.ne.s32.totalorder %s116, %s118
    %p125 = scmp.eq.s32.totalorder %s24, 1
    %p126 = por %p124, %p125
    %p127 = scmp.ne.s32.totalorder %s118, %s119
    %p128 = scmp.eq.s32.totalorder %s24, 0
    %p129 = por %p127, %p128
    %p130 = scmp.ne.s32.totalorder %s118, %s119
    %p131 = scmp.eq.s32.totalorder %s25, 1
    %p132 = por %p130, %p131
    %p134 = scmp.ne.s32.totalorder %s119, %s133
    %p135 = scmp.eq.s32.totalorder %s25, 0
    %p136 = por %p134, %p135
    %s138 = sadd.s32 %s137, 1
    %p141 = scmp.eq.s32.totalorder %s19, 1
    %p142 = scmp.ne.s32.totalorder %s137, %s139
    %p143 = scmp.eq.s32.totalorder %s19, 0
    %p144 = por %p142, %p143
    %p145 = scmp.ne.s32.totalorder %s137, %s139
    %p146 = scmp.eq.s32.totalorder %s24, 1
    %p147 = por %p145, %p146
    %p148 = scmp.ne.s32.totalorder %s139, %s140
    %p149 = scmp.eq.s32.totalorder %s24, 0
    %p150 = por %p148, %p149
    %p151 = scmp.ne.s32.totalorder %s139, %s140
    %p152 = scmp.eq.s32.totalorder %s25, 1
    %p153 = por %p151, %p152
    %p155 = scmp.ne.s32.totalorder %s140, %s154
    %p156 = scmp.eq.s32.totalorder %s25, 0
    %p157 = por %p155, %p156
    %s159 = sadd.s32 %s158, 1
    %p162 = scmp.eq.s32.totalorder %s19, 1
    %p163 = scmp.ne.s32.totalorder %s158, %s160
    %p164 = scmp.eq.s32.totalorder %s19, 0
    %p165 = por %p163, %p164
    %p166 = scmp.ne.s32.totalorder %s158, %s160
    %p167 = scmp.eq.s32.totalorder %s24, 1
    %p168 = por %p166, %p167
    %p169 = scmp.ne.s32.totalorder %s160, %s161
    %p170 = scmp.eq.s32.totalorder %s24, 0
    %p171 = por %p169, %p170
    %p172 = scmp.ne.s32.totalorder %s160, %s161
    %p173 = scmp.eq.s32.totalorder %s25, 1
    %p174 = por %p172, %p173
    %p176 = scmp.ne.s32.totalorder %s161, %s175
    %p177 = scmp.eq.s32.totalorder %s25, 0
    %p178 = por %p176, %p177
    %s180 = sadd.s32 %s179, 1
    %p183 = scmp.eq.s32.totalorder %s19, 1
    %p184 = scmp.ne.s32.totalorder %s179, %s181
    %p185 = scmp.eq.s32.totalorder %s19, 0
    %p186 = por %p184, %p185
    %p187 = scmp.ne.s32.totalorder %s179, %s181
    %p188 = scmp.eq.s32.totalorder %s24, 1
    %p189 = por %p187, %p188
    %p190 = scmp.ne.s32.totalorder %s181, %s182
    %p191 = scmp.eq.s32.totalorder %s24, 0
    %p192 = por %p190, %p191
    %p193 = scmp.ne.s32.totalorder %s181, %s182
    %p194 = scmp.eq.s32.totalorder %s25, 1
    %p195 = por %p193, %p194
    %p197 = scmp.ne.s32.totalorder %s182, %s196
    %p198 = scmp.eq.s32.totalorder %s25, 0
    %p199 = por %p197, %p198
    %s201 = sadd.s32 %s200, 1
    %p204 = scmp.eq.s32.totalorder %s19, 1
    %p205 = scmp.ne.s32.totalorder %s200, %s202
    %p206 = scmp.eq.s32.totalorder %s19, 0
    %p207 = por %p205, %p206
    %p208 = scmp.ne.s32.totalorder %s200, %s202
    %p209 = scmp.eq.s32.totalorder %s24, 1
    %p210 = por %p208, %p209
    %p211 = scmp.ne.s32.totalorder %s202, %s203
    %p212 = scmp.eq.s32.totalorder %s24, 0
    %p213 = por %p211, %p212
    %p214 = scmp.ne.s32.totalorder %s202, %s203
    %p215 = scmp.eq.s32.totalorder %s25, 1
    %p216 = por %p214, %p215
    %p218 = scmp.ne.s32.totalorder %s203, %s217
    %p219 = scmp.eq.s32.totalorder %s25, 0
    %p220 = por %p218, %p219
    %s222 = sadd.s32 %s221, 1
    %p225 = scmp.eq.s32.totalorder %s19, 1
    %p226 = scmp.ne.s32.totalorder %s221, %s223
    %p227 = scmp.eq.s32.totalorder %s19, 0
    %p228 = por %p226, %p227
    %p229 = scmp.ne.s32.totalorder %s221, %s223
    %p230 = scmp.eq.s32.totalorder %s24, 1
    %p231 = por %p229, %p230
    %p232 = scmp.ne.s32.totalorder %s223, %s224
    %p233 = scmp.eq.s32.totalorder %s24, 0
    %p234 = por %p232, %p233
    %p235 = scmp.ne.s32.totalorder %s223, %s224
    %p236 = scmp.eq.s32.totalorder %s25, 1
    %p237 = por %p235, %p236
    %p239 = scmp.ne.s32.totalorder %s224, %s238
    %p240 = scmp.eq.s32.totalorder %s25, 0
    %p241 = por %p239, %p240
    %s243 = sadd.s32 %s242, 1
    %p246 = scmp.eq.s32.totalorder %s19, 1
    %p247 = scmp.ne.s32.totalorder %s242, %s244
    %p248 = scmp.eq.s32.totalorder %s19, 0
    %p249 = por %p247, %p248
    %p250 = scmp.ne.s32.totalorder %s242, %s244
    %p251 = scmp.eq.s32.totalorder %s24, 1
    %p252 = por %p250, %p251
    %p253 = scmp.ne.s32.totalorder %s244, %s245
    %p254 = scmp.eq.s32.totalorder %s24, 0
    %p255 = por %p253, %p254
    %p256 = scmp.ne.s32.totalorder %s244, %s245
    %p257 = scmp.eq.s32.totalorder %s25, 1
    %p258 = por %p256, %p257
    %p260 = scmp.ne.s32.totalorder %s245, %s259
    %p261 = scmp.eq.s32.totalorder %s25, 0
    %p262 = por %p260, %p261
    %s264 = sadd.s32 %s263, 1
    %p267 = scmp.eq.s32.totalorder %s19, 1
    %p268 = scmp.ne.s32.totalorder %s263, %s265
    %p269 = scmp.eq.s32.totalorder %s19, 0
    %p270 = por %p268, %p269
    %p271 = scmp.ne.s32.totalorder %s263, %s265
    %p272 = scmp.eq.s32.totalorder %s24, 1
    %p273 = por %p271, %p272
    %p274 = scmp.ne.s32.totalorder %s265, %s266
    %p275 = scmp.eq.s32.totalorder %s24, 0
    %p276 = por %p274, %p275
    %p277 = scmp.ne.s32.totalorder %s265, %s266
    %p278 = scmp.eq.s32.totalorder %s25, 1
    %p279 = por %p277, %p278
    %p281 = scmp.ne.s32.totalorder %s266, %s280
    %p282 = scmp.eq.s32.totalorder %s25, 0
    %p283 = por %p281, %p282
    %s285 = sadd.s32 %s284, 1
    %p288 = scmp.eq.s32.totalorder %s19, 1
    %p289 = scmp.ne.s32.totalorder %s284, %s286
    %p290 = scmp.eq.s32.totalorder %s19, 0
    %p291 = por %p289, %p290
    %p292 = scmp.ne.s32.totalorder %s284, %s286
    %p293 = scmp.eq.s32.totalorder %s24, 1
    %p294 = por %p292, %p293
    %p295 = scmp.ne.s32.totalorder %s286, %s287
    %p296 = scmp.eq.s32.totalorder %s24, 0
    %p297 = por %p295, %p296
    %p298 = scmp.ne.s32.totalorder %s286, %s287
    %p299 = scmp.eq.s32.totalorder %s25, 1
    %p300 = por %p298, %p299
    %p302 = scmp.ne.s32.totalorder %s287, %s301
    %p303 = scmp.eq.s32.totalorder %s25, 0
    %p304 = por %p302, %p303
    %s305 = ssub.s32 %s19, %s26
    %p306 = scmp.eq.s32.totalorder %s305, 0
    %s308 = sadd.s32 %s307, 1
    %s309 = scalar_select %p306, %s307, %s308
    %p312 = pneg %p306
    %p313 = scmp.eq.s32.totalorder %s19, 1
    %p314 = por %p312, %p313
    %p315 = scmp.ne.s32.totalorder %s307, %s310
    %p316 = scmp.eq.s32.totalorder %s19, 0
    %p317 = por %p315, %p316
    %p318 = scmp.ne.s32.totalorder %s307, %s310
    %p319 = scmp.eq.s32.totalorder %s24, 1
    %p320 = por %p318, %p319
    %p321 = scmp.ne.s32.totalorder %s310, %s311
    %p322 = scmp.eq.s32.totalorder %s24, 0
    %p323 = por %p321, %p322
    %p324 = scmp.ne.s32.totalorder %s310, %s311
    %p325 = scmp.eq.s32.totalorder %s25, 1
    %p326 = por %p324, %p325
    %p328 = scmp.ne.s32.totalorder %s311, %s327
    %p329 = scmp.eq.s32.totalorder %s25, 0
    %p330 = por %p328, %p329
    %p331 = scmp.le.s32.totalorder 1, %s19
    %p332 = scmp.lt.s32.totalorder %s19, 3
    %p333 = pnand %p331, %p332
    %p334 = pneg %p333
    // Predicated region
    $region9: #{run_pallas.1} parent=5 // pred_check
      _
    $region10: #{run_pallas.1} parent=5 // pred_check_branch
      %336 = sbr.rel (%p333) target = $region12
    $region11: #{run_pallas.1} parent=5 // pred_region
      %s337 = ssub.s32 %s19, 1
      // Predicated region
      $region13: #{run_pallas.1} parent=11 // pred_check
        %p338 = pneg %p66
      $region14: #{run_pallas.1} parent=11 // pred_check_branch
        %340 = sbr.rel (%p338) target = $region16
      $region15: #{run_pallas.1} parent=11 // pred_region
        _
      $region16: #{run_pallas.1} parent=11 // pred_fallthru
        _
      // Predicated region
      $region17: #{run_pallas.1} parent=11 // pred_check
        %p341 = pneg %p87
      $region18: #{run_pallas.1} parent=11 // pred_check_branch
        %343 = sbr.rel (%p341) target = $region20
      $region19: #{run_pallas.1} parent=11 // pred_region
        _
      $region20: #{run_pallas.1} parent=11 // pred_fallthru
        _
      // Predicated region
      $region21: #{run_pallas.1} parent=11 // pred_check
        %p344 = pneg %p108
      $region22: #{run_pallas.1} parent=11 // pred_check_branch
        %346 = sbr.rel (%p344) target = $region24
      $region23: #{run_pallas.1} parent=11 // pred_region
        _
      $region24: #{run_pallas.1} parent=11 // pred_fallthru
        _
      // Predicated region
      $region25: #{run_pallas.1} parent=11 // pred_check
        %p347 = pneg %p129
      $region26: #{run_pallas.1} parent=11 // pred_check_branch
        %349 = sbr.rel (%p347) target = $region28
      $region27: #{run_pallas.1} parent=11 // pred_region
        _
      $region28: #{run_pallas.1} parent=11 // pred_fallthru
        _
      // Predicated region
      $region29: #{run_pallas.1} parent=11 // pred_check
        %p350 = pneg %p150
      $region30: #{run_pallas.1} parent=11 // pred_check_branch
        %352 = sbr.rel (%p350) target = $region32
      $region31: #{run_pallas.1} parent=11 // pred_region
        _
      $region32: #{run_pallas.1} parent=11 // pred_fallthru
        _
      // Predicated region
      $region33: #{run_pallas.1} parent=11 // pred_check
        %p353 = pneg %p171
      $region34: #{run_pallas.1} parent=11 // pred_check_branch
        %355 = sbr.rel (%p353) target = $region36
      $region35: #{run_pallas.1} parent=11 // pred_region
        _
      $region36: #{run_pallas.1} parent=11 // pred_fallthru
        _
      // Predicated region
      $region37: #{run_pallas.1} parent=11 // pred_check
        %p356 = pneg %p192
      $region38: #{run_pallas.1} parent=11 // pred_check_branch
        %358 = sbr.rel (%p356) target = $region40
      $region39: #{run_pallas.1} parent=11 // pred_region
        _
      $region40: #{run_pallas.1} parent=11 // pred_fallthru
        _
      // Predicated region
      $region41: #{run_pallas.1} parent=11 // pred_check
        %p359 = pneg %p213
      $region42: #{run_pallas.1} parent=11 // pred_check_branch
        %361 = sbr.rel (%p359) target = $region44
      $region43: #{run_pallas.1} parent=11 // pred_region
        _
      $region44: #{run_pallas.1} parent=11 // pred_fallthru
        _
      // Predicated region
      $region45: #{run_pallas.1} parent=11 // pred_check
        %p362 = pneg %p234
      $region46: #{run_pallas.1} parent=11 // pred_check_branch
        %364 = sbr.rel (%p362) target = $region48
      $region47: #{run_pallas.1} parent=11 // pred_region
        _
      $region48: #{run_pallas.1} parent=11 // pred_fallthru
        _
      // Predicated region
      $region49: #{run_pallas.1} parent=11 // pred_check
        %p365 = pneg %p255
      $region50: #{run_pallas.1} parent=11 // pred_check_branch
        %367 = sbr.rel (%p365) target = $region52
      $region51: #{run_pallas.1} parent=11 // pred_region
        _
      $region52: #{run_pallas.1} parent=11 // pred_fallthru
        _
      // Predicated region
      $region53: #{run_pallas.1} parent=11 // pred_check
        %p368 = pneg %p276
      $region54: #{run_pallas.1} parent=11 // pred_check_branch
        %370 = sbr.rel (%p368) target = $region56
      $region55: #{run_pallas.1} parent=11 // pred_region
        _
      $region56: #{run_pallas.1} parent=11 // pred_fallthru
        _
      // Predicated region
      $region57: #{run_pallas.1} parent=11 // pred_check
        %p371 = pneg %p297
      $region58: #{run_pallas.1} parent=11 // pred_check_branch
        %373 = sbr.rel (%p371) target = $region60
      $region59: #{run_pallas.1} parent=11 // pred_region
        _
      $region60: #{run_pallas.1} parent=11 // pred_fallthru
        _
    $region12: #{run_pallas.1} parent=5 // pred_fallthru
      _
    %p374 = scmp.lt.s32.totalorder %s19, 2
    // Predicated region
    $region61: #{run_pallas.1} parent=5 // pred_check
      %p375 = pneg %p374
    $region62: #{run_pallas.1} parent=5 // pred_check_branch
      %377 = sbr.rel (%p375) target = $region64
    $region63: #{run_pallas.1} parent=5 // pred_region
      // Predicated region
      $region65: #{run_pallas.1} parent=63 // pred_check
        %p378 = pneg %p39
      $region66: #{run_pallas.1} parent=63 // pred_check_branch
        %380 = sbr.rel (%p378) target = $region68
      $region67: #{run_pallas.1} parent=63 // pred_region
        %s381 = smul.u32 2, %s19
        %p382 = scmp.lt.s32.totalorder %s381, 3
        %s383 = scalar_select %p382, %s381, 3
        %s384 = smul.addr %s383, 8
        %s385 = scalar_lea.vmem %s0, %s384
        %s386 = smul.u32 2, %s19
      $region68: #{run_pallas.1} parent=63 // pred_fallthru
        _
    $region64: #{run_pallas.1} parent=5 // pred_fallthru
      _
    %p387 = scmp.le.s32.totalorder 1, %s19
    %p388 = scmp.lt.s32.totalorder %s19, 3
    %p389 = pnand %p387, %p388
    %p390 = pneg %p389
    // Predicated region
    $region69: #{run_pallas.1} parent=5 // pred_check
      _
    $region70: #{run_pallas.1} parent=5 // pred_check_branch
      %392 = sbr.rel (%p389) target = $region72
    $region71: #{run_pallas.1} parent=5 // pred_region
      %s393 = ssub.s32 %s19, 1
      %s394 = smul.u32 2, %s24
      %p395 = scmp.lt.s32.totalorder %s394, 3
      %s396 = scalar_select %p395, %s394, 3
      %s397 = smul.addr %s396, 8
      %s398 = scalar_lea.vmem %s0, %s397
      %p399 = pneg %p45
      %p400 = pneg %p42
      %p401 = pneg %p66
      %p402 = pneg %p63
      %p403 = pneg %p87
      %p404 = pneg %p84
      %p405 = pneg %p108
      %p406 = pneg %p105
      %p407 = pneg %p129
      %p408 = pneg %p126
      %p409 = pneg %p150
      %p410 = pneg %p147
      %p411 = pneg %p171
      %p412 = pneg %p168
      %p413 = pneg %p192
      %p414 = pneg %p189
      %p415 = pneg %p213
      %p416 = pneg %p210
      %p417 = pneg %p234
      %p418 = pneg %p231
      %p419 = pneg %p255
      %p420 = pneg %p252
      %p421 = pneg %p276
      %p422 = pneg %p273
      %p423 = pneg %p297
      %p424 = pneg %p294
      %p425 = pneg %p323
      %p426 = pneg %p320
      %s427 = smul.u32 2, %s24
      %p428 = scmp.lt.s32.totalorder %s427, 3
      %s429 = scalar_select %p428, %s427, 3
      %s430 = smul.addr %s429, 8
      %s431 = scalar_lea.vmem %s13, %s430
      %s432 = smul.u32 2, %s24
      %p433 = scmp.lt.s32.totalorder %s432, 3
      %s434 = scalar_select %p433, %s432, 3
      %s435 = smul.addr %s434, 8
      %s436 = scalar_lea.vmem %s0, %s435
      %s437 = smul.u32 2, %s24
      %s438 = smul.u32 2, %s24
      %p439 = scmp.lt.s32.totalorder %s438, 3
      %s440 = scalar_select %p439, %s438, 3
      %s441 = smul.addr %s440, 8
      %s442 = scalar_lea.vmem %s13, %s441
      %s443 = smul.u32 2, %s24
      %v444 = vld [vmem:[%s436] sm:$0xff]
      %v445 = vld [vmem:[%s436 + $0x8] sm:$0xff]
      %v446 = vld [vmem:[%s1] sm:$0xff]
      %v447 = vld [vmem:[%s1 + $0x8] sm:$0xff]
      %v448 = vld [vmem:[%s1 + $0x10] sm:$0xff]
      %v449 = vld [vmem:[%s1 + $0x18] sm:$0xff]
      %v450 = vld [vmem:[%s1 + $0x20] sm:$0xff]
      %v451 = vld [vmem:[%s1 + $0x28] sm:$0xff]
      %v452 = vld [vmem:[%s1 + $0x30] sm:$0xff]
      %v453 = vld [vmem:[%s1 + $0x38] sm:$0xff]
      %v454 = vld [vmem:[%s1 + $0x40] sm:$0xff]
      %v455 = vld [vmem:[%s1 + $0x48] sm:$0xff]
      %v456 = vld [vmem:[%s1 + $0x50] sm:$0xff]
      %v457 = vld [vmem:[%s1 + $0x58] sm:$0xff]
      %v458 = vld [vmem:[%s1 + $0x60] sm:$0xff]
      %v459 = vld [vmem:[%s1 + $0x68] sm:$0xff]
      %v460 = vld [vmem:[%s1 + $0x70] sm:$0xff]
      %v461 = vld [vmem:[%s1 + $0x78] sm:$0xff]
      %v462 = vld [vmem:[%s1 + $0x80] sm:$0xff]
      %v463 = vld [vmem:[%s1 + $0x88] sm:$0xff]
      %v464 = vld [vmem:[%s1 + $0x90] sm:$0xff]
      %v465 = vld [vmem:[%s1 + $0x98] sm:$0xff]
      %v466 = vld [vmem:[%s1 + $0xa0] sm:$0xff]
      %v467 = vld [vmem:[%s1 + $0xa8] sm:$0xff]
      %v468 = vld [vmem:[%s1 + $0xb0] sm:$0xff]
      %v469 = vld [vmem:[%s1 + $0xb8] sm:$0xff]
      %v470 = vld [vmem:[%s1 + $0xc0] sm:$0xff]
      %v471 = vld [vmem:[%s1 + $0xc8] sm:$0xff]
      %v472 = vld [vmem:[%s1 + $0xd0] sm:$0xff]
      %v473 = vld [vmem:[%s1 + $0xd8] sm:$0xff]
      %v474 = vld [vmem:[%s1 + $0xe0] sm:$0xff]
      %v475 = vld [vmem:[%s1 + $0xe8] sm:$0xff]
      %v476 = vld [vmem:[%s1 + $0xf0] sm:$0xff]
      %v477 = vld [vmem:[%s1 + $0xf8] sm:$0xff]
      %v478 = vld [vmem:[%s2] sm:$0x3]
      %v480 = vlaneseq
      %v481 = vshrl.u32 %v480, 7
      %v482 = vsub.s32 0, %v481
      %v483 = vrot.slane %v478, %v482
      %v484 = vlaneseq
      %v485 = vshrl.u32 %v484, 7
      %v486 = vsub.s32 1, %v485
      %v487 = vrot.slane %v478, %v486
      %490 = vmatprep.subr.mxu0 %v447
      %491 = vmatpush1.msra.mxu0 %v446
      %492 = vmatprep.subr.mxu0 %v449
      %493 = vmatpush1.msra.mxu0 %v448
      %494 = vmatprep.subr.mxu0 %v451
      %495 = vmatpush1.msra.mxu0 %v450
      %496 = vmatprep.subr.mxu0 %v453
      %497 = vmatpush1.msra.mxu0 %v452
      %498 = vmatprep.subr.mxu0 %v455
      %499 = vmatpush1.msra.mxu0 %v454
      %500 = vmatprep.subr.mxu0 %v457
      %501 = vmatpush1.msra.mxu0 %v456
      %502 = vmatprep.subr.mxu0 %v459
      %503 = vmatpush1.msra.mxu0 %v458
      %504 = vmatprep.subr.mxu0 %v461
      %505 = vmatpush1.msra.mxu0 %v460
      %506 = vmatprep.subr.mxu0 %v463
      %507 = vmatpush1.msra.mxu0 %v462
      %508 = vmatprep.subr.mxu0 %v465
      %509 = vmatpush1.msra.mxu0 %v464
      %510 = vmatprep.subr.mxu0 %v467
      %511 = vmatpush1.msra.mxu0 %v466
      %512 = vmatprep.subr.mxu0 %v469
      %513 = vmatpush1.msra.mxu0 %v468
      %514 = vmatprep.subr.mxu0 %v471
      %515 = vmatpush1.msra.mxu0 %v470
      %516 = vmatprep.subr.mxu0 %v473
      %517 = vmatpush1.msra.mxu0 %v472
      %518 = vmatprep.subr.mxu0 %v475
      %519 = vmatpush1.msra.mxu0 %v474
      %520 = vmatprep.subr.mxu0 %v477
      %521 = vmatpush1.msra.mxu0 %v476
      %522 = vmatprep.subr.mxu0 0.0
      %523 = vmatpush1.msra.mxu0 0.0
      %524 = vmatprep.subr.mxu0 0.0
      %525 = vmatpush1.msra.mxu0 0.0
      %526 = vmatprep.subr.mxu0 0.0
      %527 = vmatpush1.msra.mxu0 0.0
      %528 = vmatprep.subr.mxu0 0.0
      %529 = vmatpush1.msra.mxu0 0.0
      %530 = vmatprep.subr.mxu0 0.0
      %531 = vmatpush1.msra.mxu0 0.0
      %532 = vmatprep.subr.mxu0 0.0
      %533 = vmatpush1.msra.mxu0 0.0
      %534 = vmatprep.subr.mxu0 0.0
      %535 = vmatpush1.msra.mxu0 0.0
      %536 = vmatprep.subr.mxu0 0.0
      %537 = vmatpush1.msra.mxu0 0.0
      %538 = vmatprep.subr.mxu0 0.0
      %539 = vmatpush1.msra.mxu0 0.0
      %540 = vmatprep.subr.mxu0 0.0
      %541 = vmatpush1.msra.mxu0 0.0
      %542 = vmatprep.subr.mxu0 0.0
      %543 = vmatpush1.msra.mxu0 0.0
      %544 = vmatprep.subr.mxu0 0.0
      %545 = vmatpush1.msra.mxu0 0.0
      %546 = vmatprep.subr.mxu0 0.0
      %547 = vmatpush1.msra.mxu0 0.0
      %548 = vmatprep.subr.mxu0 0.0
      %549 = vmatpush1.msra.mxu0 0.0
      %550 = vmatprep.subr.mxu0 0.0
      %551 = vmatpush1.msra.mxu0 0.0
      %552 = vmatprep.subr.mxu0 0.0
      %553 = vmatpush1.msra.mxu0 0.0
      %554 = vmatprep.mubr.f32.mxu0 0.0
      %555 = vmatmul.mubr.f32.gmra.mrb[0].mxu0 %v444
      %v556 = vpop.f32.mrb[0].mxu0
      %v557 = vadd.f32 %v483, %v556
      %v558 = vpop.f32.mrb[0].mxu0
      %v559 = vadd.f32 %v487, %v558
      %560 = vmatprep.mubr.f32.mxu0 0.0
      %561 = vmatmul.mubr.f32.gmra.mrb[0].mxu0 %v445
      %v562 = vpop.f32.mrb[0].mxu0
      %v563 = vadd.f32 %v483, %v562
      %v564 = vpop.f32.mrb[0].mxu0
      %v565 = vadd.f32 %v487, %v564
      %566 = vdwg.mxu0
      %v567 = vadd.f32 %v557, 3.0
      %v568 = vadd.f32 %v559, 3.0
      %v569 = vadd.f32 %v563, 3.0
      %v570 = vadd.f32 %v565, 3.0
      %v571 = vmax.f32 %v567, 0.0
      %v572 = vmax.f32 %v568, 0.0
      %v573 = vmax.f32 %v569, 0.0
      %v574 = vmax.f32 %v570, 0.0
      %v575 = vmin.f32 %v571, 6.0
      %v576 = vmin.f32 %v572, 6.0
      %v577 = vmin.f32 %v573, 6.0
      %v578 = vmin.f32 %v574, 6.0
      %v579 = vmul.f32 %v557, %v575
      %v580 = vmul.f32 %v559, %v576
      %v581 = vmul.f32 %v563, %v577
      %v582 = vmul.f32 %v565, %v578
      %v583 = vmul.f32 %v579, 0.16666667
      %v584 = vmul.f32 %v580, 0.16666667
      %v585 = vmul.f32 %v581, 0.16666667
      %v586 = vmul.f32 %v582, 0.16666667
      %v587 = vld [vmem:[%s3] sm:$0xf]
      %v588 = vld [vmem:[%s3 + $0x4] sm:$0xf]
      %v589 = vld [vmem:[%s3 + $0x8] sm:$0xf]
      %v590 = vld [vmem:[%s3 + $0xc] sm:$0xf]
      %v591 = vld [vmem:[%s3 + $0x10] sm:$0xf]
      %v592 = vld [vmem:[%s3 + $0x14] sm:$0xf]
      %v593 = vunpack.c.l.bf16 %v587
      %v594 = vunpack.c.l.bf16 %v588
      %v595 = vunpack.c.l.bf16 %v589
      %v596 = vunpack.c.l.bf16 %v590
      %v597 = vunpack.c.l.bf16 %v591
      %v598 = vunpack.c.l.bf16 %v592
      %v599 = vld [vmem:[%s4] sm:$0xff]
      %v600 = vld [vmem:[%s4 + $0x8] sm:$0xff]
      %v601 = vld [vmem:[%s4 + $0x10] sm:$0x1]
      %v602 = vld [vmem:[%s4 + $0x18] sm:$0x1]
      %vm603 = vcmask 130048
      %v605 = vsel %vm603, %v593, 0
      %v608 = vsel %vm603, %v594, 0
      %610 = vmatprep.subr.mxu0 %v584
      %611 = vmatpush1.msra.mxu0 %v583
      %612 = vmatprep.subr.mxu0 %v586
      %613 = vmatpush1.msra.mxu0 %v585
      %614 = vmatprep.subr.mxu0 0.0
      %615 = vmatpush1.msra.mxu0 0.0
      %616 = vmatprep.subr.mxu0 0.0
      %617 = vmatpush1.msra.mxu0 0.0
      %618 = vmatprep.subr.mxu0 0.0
      %619 = vmatpush1.msra.mxu0 0.0
      %620 = vmatprep.subr.mxu0 0.0
      %621 = vmatpush1.msra.mxu0 0.0
      %622 = vmatprep.subr.mxu0 0.0
      %623 = vmatpush1.msra.mxu0 0.0
      %624 = vmatprep.subr.mxu0 0.0
      %625 = vmatpush1.msra.mxu0 0.0
      %626 = vmatprep.subr.mxu0 0.0
      %627 = vmatpush1.msra.mxu0 0.0
      %628 = vmatprep.subr.mxu0 0.0
      %629 = vmatpush1.msra.mxu0 0.0
      %630 = vmatprep.subr.mxu0 0.0
      %631 = vmatpush1.msra.mxu0 0.0
      %632 = vmatprep.subr.mxu0 0.0
      %633 = vmatpush1.msra.mxu0 0.0
      %634 = vmatprep.subr.mxu0 0.0
      %635 = vmatpush1.msra.mxu0 0.0
      %636 = vmatprep.subr.mxu0 0.0
      %637 = vmatpush1.msra.mxu0 0.0
      %638 = vmatprep.subr.mxu0 0.0
      %639 = vmatpush1.msra.mxu0 0.0
      %640 = vmatprep.subr.mxu0 0.0
      %641 = vmatpush1.msra.mxu0 0.0
      %642 = vmatprep.subr.mxu0 0.0
      %643 = vmatpush1.msra.mxu0 0.0
      %644 = vmatprep.subr.mxu0 0.0
      %645 = vmatpush1.msra.mxu0 0.0
      %646 = vmatprep.subr.mxu0 0.0
      %647 = vmatpush1.msra.mxu0 0.0
      %648 = vmatprep.subr.mxu0 0.0
      %649 = vmatpush1.msra.mxu0 0.0
      %650 = vmatprep.subr.mxu0 0.0
      %651 = vmatpush1.msra.mxu0 0.0
      %652 = vmatprep.subr.mxu0 0.0
      %653 = vmatpush1.msra.mxu0 0.0
      %654 = vmatprep.subr.mxu0 0.0
      %655 = vmatpush1.msra.mxu0 0.0
      %656 = vmatprep.subr.mxu0 0.0
      %657 = vmatpush1.msra.mxu0 0.0
      %658 = vmatprep.subr.mxu0 0.0
      %659 = vmatpush1.msra.mxu0 0.0
      %660 = vmatprep.subr.mxu0 0.0
      %661 = vmatpush1.msra.mxu0 0.0
      %662 = vmatprep.subr.mxu0 0.0
      %663 = vmatpush1.msra.mxu0 0.0
      %664 = vmatprep.subr.mxu0 0.0
      %665 = vmatpush1.msra.mxu0 0.0
      %666 = vmatprep.subr.mxu0 0.0
      %667 = vmatpush1.msra.mxu0 0.0
      %668 = vmatprep.subr.mxu0 0.0
      %669 = vmatpush1.msra.mxu0 0.0
      %670 = vmatprep.subr.mxu0 0.0
      %671 = vmatpush1.msra.mxu0 0.0
      %672 = vmatprep.subr.mxu0 0.0
      %673 = vmatpush1.msra.mxu0 0.0
      %674 = vmatprep.mubr.f32.mxu0 0.0
      %675 = vmatmul.mubr.f32.gmra.mrb[0].mxu0 %v605
      %v676 = vpop.f32.mrb[0].mxu0
      %v677 = vadd.f32 0.0, %v676
      %v678 = vpop.f32.mrb[0].mxu0
      %v679 = vadd.f32 0.0, %v678
      %680 = vmatprep.mubr.f32.mxu0 0.0
      %681 = vmatmul.mubr.f32.gmra.mrb[0].mxu0 %v608
      %v682 = vpop.f32.mrb[0].mxu0
      %v683 = vadd.f32 0.0, %v682
      %v684 = vpop.f32.mrb[0].mxu0
      %v685 = vadd.f32 0.0, %v684
      %686 = vdwg.mxu0
      %687 = vrot.lane.b32.xlu0 %v677, 16
      %v688 = vpop.permute.xlu0 %687
      %689 = vrot.lane.b32.xlu0 %v683, 16
      %v690 = vpop.permute.xlu0 %689
      %691 = vrot.lane.b32.xlu0 %v679, 16
      %v692 = vpop.permute.xlu0 %691
      %693 = vrot.lane.b32.xlu0 %v685, 16
      %v694 = vpop.permute.xlu0 %693
      %v695 = vlaneseq
      %v696 = vand.u32 %v695, 127
      %vm697 = vcmp.lt.s32.totalorder %v696, 16
      %v698 = vsel %vm697, %v688, %v692
      %v699 = vsel %vm697, %v690, %v694
      %v700 = vsel %vm697, %v692, %v688
      %v701 = vsel %vm697, %v694, %v690
      %v702 = vlaneseq
      %v703 = vshrl.u32 %v702, 7
      %v704 = vsub.s32 0, %v703
      %v705 = vrot.slane %v599, %v704
      %v706 = vlaneseq
      %v707 = vshrl.u32 %v706, 7
      %v708 = vsub.s32 0, %v707
      %v709 = vrot.slane %v600, %v708
      %v710 = vmul.f32 %v700, %v705
      %v711 = vmul.f32 %v698, %v709
      %v712 = vmul.f32 %v701, %v705
      %v713 = vmul.f32 %v699, %v709
      %v714 = vlaneseq
      %v715 = vshrl.u32 %v714, 7
      %v716 = vsub.s32 1, %v715
      %v717 = vrot.slane %v599, %v716
      %v718 = vlaneseq
      %v719 = vshrl.u32 %v718, 7
      %v720 = vsub.s32 1, %v719
      %v721 = vrot.slane %v600, %v720
      %v722 = vmul.f32 %v677, %v717
      %v723 = vmul.f32 %v679, %v721
      %v724 = vmul.f32 %v683, %v717
      %v725 = vmul.f32 %v685, %v721
      %v726 = vadd.f32 %v710, %v722
      %v727 = vadd.f32 %v711, %v723
      %v728 = vadd.f32 %v712, %v724
      %v729 = vadd.f32 %v713, %v725
      %730 = vrot.lane.b32.xlu0 %v677, 112
      %v731 = vpop.permute.xlu0 %730
      %732 = vrot.lane.b32.xlu0 %v683, 112
      %v733 = vpop.permute.xlu0 %732
      %734 = vrot.lane.b32.xlu0 %v679, 112
      %v735 = vpop.permute.xlu0 %734
      %736 = vrot.lane.b32.xlu0 %v685, 112
      %v737 = vpop.permute.xlu0 %736
      %vm738 = vcmp.lt.s32.totalorder %v696, 112
      %v739 = vsel %vm738, %v731, %v735
      %v740 = vsel %vm738, %v733, %v737
      %v741 = vsel %vm738, %v735, %v731
      %v742 = vsel %vm738, %v737, %v733
      %v743 = vlaneseq
      %v744 = vshrl.u32 %v743, 7
      %v745 = vsub.s32 2, %v744
      %v746 = vrot.slane %v599, %v745
      %v747 = vlaneseq
      %v748 = vshrl.u32 %v747, 7
      %v749 = vsub.s32 2, %v748
      %v750 = vrot.slane %v600, %v749
      %v751 = vmul.f32 %v739, %v746
      %v752 = vmul.f32 %v741, %v750
      %v753 = vmul.f32 %v740, %v746
      %v754 = vmul.f32 %v742, %v750
      %v755 = vadd.f32 %v726, %v751
      %v756 = vadd.f32 %v727, %v752
      %v757 = vadd.f32 %v728, %v753
      %v758 = vadd.f32 %v729, %v754
      %v760 = vsel %vm603, %v595, 0
      %v763 = vsel %vm603, %v596, 0
      %765 = vmatprep.subr.mxu0 %v584
      %766 = vmatpush1.msra.mxu0 %v583
      %767 = vmatprep.subr.mxu0 %v586
      %768 = vmatpush1.msra.mxu0 %v585
      %769 = vmatprep.subr.mxu0 0.0
      %770 = vmatpush1.msra.mxu0 0.0
      %771 = vmatprep.subr.mxu0 0.0
      %772 = vmatpush1.msra.mxu0 0.0
      %773 = vmatprep.subr.mxu0 0.0
      %774 = vmatpush1.msra.mxu0 0.0
      %775 = vmatprep.subr.mxu0 0.0
      %776 = vmatpush1.msra.mxu0 0.0
      %777 = vmatprep.subr.mxu0 0.0
      %778 = vmatpush1.msra.mxu0 0.0
      %779 = vmatprep.subr.mxu0 0.0
      %780 = vmatpush1.msra.mxu0 0.0
      %781 = vmatprep.subr.mxu0 0.0
      %782 = vmatpush1.msra.mxu0 0.0
      %783 = vmatprep.subr.mxu0 0.0
      %784 = vmatpush1.msra.mxu0 0.0
      %785 = vmatprep.subr.mxu0 0.0
      %786 = vmatpush1.msra.mxu0 0.0
      %787 = vmatprep.subr.mxu0 0.0
      %788 = vmatpush1.msra.mxu0 0.0
      %789 = vmatprep.subr.mxu0 0.0
      %790 = vmatpush1.msra.mxu0 0.0
      %791 = vmatprep.subr.mxu0 0.0
      %792 = vmatpush1.msra.mxu0 0.0
      %793 = vmatprep.subr.mxu0 0.0
      %794 = vmatpush1.msra.mxu0 0.0
      %795 = vmatprep.subr.mxu0 0.0
      %796 = vmatpush1.msra.mxu0 0.0
      %797 = vmatprep.subr.mxu0 0.0
      %798 = vmatpush1.msra.mxu0 0.0
      %799 = vmatprep.subr.mxu0 0.0
      %800 = vmatpush1.msra.mxu0 0.0
      %801 = vmatprep.subr.mxu0 0.0
      %802 = vmatpush1.msra.mxu0 0.0
      %803 = vmatprep.subr.mxu0 0.0
      %804 = vmatpush1.msra.mxu0 0.0
      %805 = vmatprep.subr.mxu0 0.0
      %806 = vmatpush1.msra.mxu0 0.0
      %807 = vmatprep.subr.mxu0 0.0
      %808 = vmatpush1.msra.mxu0 0.0
      %809 = vmatprep.subr.mxu0 0.0
      %810 = vmatpush1.msra.mxu0 0.0
      %811 = vmatprep.subr.mxu0 0.0
      %812 = vmatpush1.msra.mxu0 0.0
      %813 = vmatprep.subr.mxu0 0.0
      %814 = vmatpush1.msra.mxu0 0.0
      %815 = vmatprep.subr.mxu0 0.0
      %816 = vmatpush1.msra.mxu0 0.0
      %817 = vmatprep.subr.mxu0 0.0
      %818 = vmatpush1.msra.mxu0 0.0
      %819 = vmatprep.subr.mxu0 0.0
      %820 = vmatpush1.msra.mxu0 0.0
      %821 = vmatprep.subr.mxu0 0.0
      %822 = vmatpush1.msra.mxu0 0.0
      %823 = vmatprep.subr.mxu0 0.0
      %824 = vmatpush1.msra.mxu0 0.0
      %825 = vmatprep.subr.mxu0 0.0
      %826 = vmatpush1.msra.mxu0 0.0
      %827 = vmatprep.subr.mxu0 0.0
      %828 = vmatpush1.msra.mxu0 0.0
      %829 = vmatprep.mubr.f32.mxu0 0.0
      %830 = vmatmul.mubr.f32.gmra.mrb[0].mxu0 %v760
      %v831 = vpop.f32.mrb[0].mxu0
      %v832 = vadd.f32 0.0, %v831
      %v833 = vpop.f32.mrb[0].mxu0
      %v834 = vadd.f32 0.0, %v833
      %835 = vmatprep.mubr.f32.mxu0 0.0
      %836 = vmatmul.mubr.f32.gmra.mrb[0].mxu0 %v763
      %v837 = vpop.f32.mrb[0].mxu0
      %v838 = vadd.f32 0.0, %v837
      %v839 = vpop.f32.mrb[0].mxu0
      %v840 = vadd.f32 0.0, %v839
      %841 = vdwg.mxu0
      %842 = vrot.lane.b32.xlu0 %v832, 16
      %v843 = vpop.permute.xlu0 %842
      %844 = vrot.lane.b32.xlu0 %v838, 16
      %v845 = vpop.permute.xlu0 %844
      %846 = vrot.lane.b32.xlu0 %v834, 16
      %v847 = vpop.permute.xlu0 %846
      %848 = vrot.lane.b32.xlu0 %v840, 16
      %v849 = vpop.permute.xlu0 %848
      %v850 = vsel %vm697, %v843, %v847
      %v851 = vsel %vm697, %v845, %v849
      %v852 = vsel %vm697, %v847, %v843
      %v853 = vsel %vm697, %v849, %v845
      %v854 = vlaneseq
      %v855 = vshrl.u32 %v854, 7
      %v856 = vsub.s32 3, %v855
      %v857 = vrot.slane %v599, %v856
      %v858 = vlaneseq
      %v859 = vshrl.u32 %v858, 7
      %v860 = vsub.s32 3, %v859
      %v861 = vrot.slane %v600, %v860
      %v862 = vmul.f32 %v852, %v857
      %v863 = vmul.f32 %v850, %v861
      %v864 = vmul.f32 %v853, %v857
      %v865 = vmul.f32 %v851, %v861
      %v866 = vadd.f32 %v755, %v862
      %v867 = vadd.f32 %v756, %v863
      %v868 = vadd.f32 %v757, %v864
      %v869 = vadd.f32 %v758, %v865
      %v870 = vlaneseq
      %v871 = vshrl.u32 %v870, 7
      %v872 = vsub.s32 4, %v871
      %v873 = vrot.slane %v599, %v872
      %v874 = vlaneseq
      %v875 = vshrl.u32 %v874, 7
      %v876 = vsub.s32 4, %v875
      %v877 = vrot.slane %v600, %v876
      %v878 = vmul.f32 %v832, %v873
      %v879 = vmul.f32 %v834, %v877
      %v880 = vmul.f32 %v838, %v873
      %v881 = vmul.f32 %v840, %v877
      %v882 = vadd.f32 %v866, %v878
      %v883 = vadd.f32 %v867, %v879
      %v884 = vadd.f32 %v868, %v880
      %v885 = vadd.f32 %v869, %v881
      %886 = vrot.lane.b32.xlu0 %v832, 112
      %v887 = vpop.permute.xlu0 %886
      %888 = vrot.lane.b32.xlu0 %v838, 112
      %v889 = vpop.permute.xlu0 %888
      %890 = vrot.lane.b32.xlu0 %v834, 112
      %v891 = vpop.permute.xlu0 %890
      %892 = vrot.lane.b32.xlu0 %v840, 112
      %v893 = vpop.permute.xlu0 %892
      %v894 = vsel %vm738, %v887, %v891
      %v895 = vsel %vm738, %v889, %v893
      %v896 = vsel %vm738, %v891, %v887
      %v897 = vsel %vm738, %v893, %v889
      %v898 = vlaneseq
      %v899 = vshrl.u32 %v898, 7
      %v900 = vsub.s32 5, %v899
      %v901 = vrot.slane %v599, %v900
      %v902 = vlaneseq
      %v903 = vshrl.u32 %v902, 7
      %v904 = vsub.s32 5, %v903
      %v905 = vrot.slane %v600, %v904
      %v906 = vmul.f32 %v894, %v901
      %v907 = vmul.f32 %v896, %v905
      %v908 = vmul.f32 %v895, %v901
      %v909 = vmul.f32 %v897, %v905
      %v910 = vadd.f32 %v882, %v906
      %v911 = vadd.f32 %v883, %v907
      %v912 = vadd.f32 %v884, %v908
      %v913 = vadd.f32 %v885, %v909
      %v915 = vsel %vm603, %v597, 0
      %v918 = vsel %vm603, %v598, 0
      %920 = vmatprep.subr.mxu0 %v584
      %921 = vmatpush1.msra.mxu0 %v583
      %922 = vmatprep.subr.mxu0 %v586
      %923 = vmatpush1.msra.mxu0 %v585
      %924 = vmatprep.subr.mxu0 0.0
      %925 = vmatpush1.msra.mxu0 0.0
      %926 = vmatprep.subr.mxu0 0.0
      %927 = vmatpush1.msra.mxu0 0.0
      %928 = vmatprep.subr.mxu0 0.0
      %929 = vmatpush1.msra.mxu0 0.0
      %930 = vmatprep.subr.mxu0 0.0
      %931 = vmatpush1.msra.mxu0 0.0
      %932 = vmatprep.subr.mxu0 0.0
      %933 = vmatpush1.msra.mxu0 0.0
      %934 = vmatprep.subr.mxu0 0.0
      %935 = vmatpush1.msra.mxu0 0.0
      %936 = vmatprep.subr.mxu0 0.0
      %937 = vmatpush1.msra.mxu0 0.0
      %938 = vmatprep.subr.mxu0 0.0
      %939 = vmatpush1.msra.mxu0 0.0
      %940 = vmatprep.subr.mxu0 0.0
      %941 = vmatpush1.msra.mxu0 0.0
      %942 = vmatprep.subr.mxu0 0.0
      %943 = vmatpush1.msra.mxu0 0.0
      %944 = vmatprep.subr.mxu0 0.0
      %945 = vmatpush1.msra.mxu0 0.0
      %946 = vmatprep.subr.mxu0 0.0
      %947 = vmatpush1.msra.mxu0 0.0
      %948 = vmatprep.subr.mxu0 0.0
      %949 = vmatpush1.msra.mxu0 0.0
      %950 = vmatprep.subr.mxu0 0.0
      %951 = vmatpush1.msra.mxu0 0.0
      %952 = vmatprep.subr.mxu0 0.0
      %953 = vmatpush1.msra.mxu0 0.0
      %954 = vmatprep.subr.mxu0 0.0
      %955 = vmatpush1.msra.mxu0 0.0
      %956 = vmatprep.subr.mxu0 0.0
      %957 = vmatpush1.msra.mxu0 0.0
      %958 = vmatprep.subr.mxu0 0.0
      %959 = vmatpush1.msra.mxu0 0.0
      %960 = vmatprep.subr.mxu0 0.0
      %961 = vmatpush1.msra.mxu0 0.0
      %962 = vmatprep.subr.mxu0 0.0
      %963 = vmatpush1.msra.mxu0 0.0
      %964 = vmatprep.subr.mxu0 0.0
      %965 = vmatpush1.msra.mxu0 0.0
      %966 = vmatprep.subr.mxu0 0.0
      %967 = vmatpush1.msra.mxu0 0.0
      %968 = vmatprep.subr.mxu0 0.0
      %969 = vmatpush1.msra.mxu0 0.0
      %970 = vmatprep.subr.mxu0 0.0
      %971 = vmatpush1.msra.mxu0 0.0
      %972 = vmatprep.subr.mxu0 0.0
      %973 = vmatpush1.msra.mxu0 0.0
      %974 = vmatprep.subr.mxu0 0.0
      %975 = vmatpush1.msra.mxu0 0.0
      %976 = vmatprep.subr.mxu0 0.0
      %977 = vmatpush1.msra.mxu0 0.0
      %978 = vmatprep.subr.mxu0 0.0
      %979 = vmatpush1.msra.mxu0 0.0
      %980 = vmatprep.subr.mxu0 0.0
      %981 = vmatpush1.msra.mxu0 0.0
      %982 = vmatprep.subr.mxu0 0.0
      %983 = vmatpush1.msra.mxu0 0.0
      %984 = vmatprep.mubr.f32.mxu0 0.0
      %985 = vmatmul.mubr.f32.gmra.mrb[0].mxu0 %v915
      %v986 = vpop.f32.mrb[0].mxu0
      %v987 = vadd.f32 0.0, %v986
      %v988 = vpop.f32.mrb[0].mxu0
      %v989 = vadd.f32 0.0, %v988
      %990 = vmatprep.mubr.f32.mxu0 0.0
      %991 = vmatmul.mubr.f32.gmra.mrb[0].mxu0 %v918
      %v992 = vpop.f32.mrb[0].mxu0
      %v993 = vadd.f32 0.0, %v992
      %v994 = vpop.f32.mrb[0].mxu0
      %v995 = vadd.f32 0.0, %v994
      %996 = vdwg.mxu0
      %997 = vrot.lane.b32.xlu0 %v987, 16
      %v998 = vpop.permute.xlu0 %997
      %999 = vrot.lane.b32.xlu0 %v993, 16
      %v1000 = vpop.permute.xlu0 %999
      %1001 = vrot.lane.b32.xlu0 %v989, 16
      %v1002 = vpop.permute.xlu0 %1001
      %1003 = vrot.lane.b32.xlu0 %v995, 16
      %v1004 = vpop.permute.xlu0 %1003
      %v1005 = vsel %vm697, %v998, %v1002
      %v1006 = vsel %vm697, %v1000, %v1004
      %v1007 = vsel %vm697, %v1002, %v998
      %v1008 = vsel %vm697, %v1004, %v1000
      %v1009 = vlaneseq
      %v1010 = vshrl.u32 %v1009, 7
      %v1011 = vsub.s32 6, %v1010
      %v1012 = vrot.slane %v599, %v1011
      %v1013 = vlaneseq
      %v1014 = vshrl.u32 %v1013, 7
      %v1015 = vsub.s32 6, %v1014
      %v1016 = vrot.slane %v600, %v1015
      %v1017 = vmul.f32 %v1007, %v1012
      %v1018 = vmul.f32 %v1005, %v1016
      %v1019 = vmul.f32 %v1008, %v1012
      %v1020 = vmul.f32 %v1006, %v1016
      %v1021 = vadd.f32 %v910, %v1017
      %v1022 = vadd.f32 %v911, %v1018
      %v1023 = vadd.f32 %v912, %v1019
      %v1024 = vadd.f32 %v913, %v1020
      %v1025 = vlaneseq
      %v1026 = vshrl.u32 %v1025, 7
      %v1027 = vsub.s32 7, %v1026
      %v1028 = vrot.slane %v599, %v1027
      %v1029 = vlaneseq
      %v1030 = vshrl.u32 %v1029, 7
      %v1031 = vsub.s32 7, %v1030
      %v1032 = vrot.slane %v600, %v1031
      %v1033 = vmul.f32 %v987, %v1028
      %v1034 = vmul.f32 %v989, %v1032
      %v1035 = vmul.f32 %v993, %v1028
      %v1036 = vmul.f32 %v995, %v1032
      %v1037 = vadd.f32 %v1021, %v1033
      %v1038 = vadd.f32 %v1022, %v1034
      %v1039 = vadd.f32 %v1023, %v1035
      %v1040 = vadd.f32 %v1024, %v1036
      %1041 = vrot.lane.b32.xlu0 %v987, 112
      %v1042 = vpop.permute.xlu0 %1041
      %1043 = vrot.lane.b32.xlu0 %v993, 112
      %v1044 = vpop.permute.xlu0 %1043
      %1045 = vrot.lane.b32.xlu0 %v989, 112
      %v1046 = vpop.permute.xlu0 %1045
      %1047 = vrot.lane.b32.xlu0 %v995, 112
      %v1048 = vpop.permute.xlu0 %1047
      %v1049 = vsel %vm738, %v1042, %v1046
      %v1050 = vsel %vm738, %v1044, %v1048
      %v1051 = vsel %vm738, %v1046, %v1042
      %v1052 = vsel %vm738, %v1048, %v1044
      %v1053 = vlaneseq
      %v1054 = vshrl.u32 %v1053, 7
      %v1055 = vsub.s32 0, %v1054
      %v1056 = vrot.slane %v601, %v1055
      %v1057 = vlaneseq
      %v1058 = vshrl.u32 %v1057, 7
      %v1059 = vsub.s32 0, %v1058
      %v1060 = vrot.slane %v602, %v1059
      %v1061 = vmul.f32 %v1049, %v1056
      %v1062 = vmul.f32 %v1051, %v1060
      %v1063 = vmul.f32 %v1050, %v1056
      %v1064 = vmul.f32 %v1052, %v1060
      %v1065 = vadd.f32 %v1037, %v1061
      %v1066 = vadd.f32 %v1038, %v1062
      %v1067 = vadd.f32 %v1039, %v1063
      %v1068 = vadd.f32 %v1040, %v1064
      %v1069 = vld [vmem:[%s5] sm:$0x3]
      %v1071 = vlaneseq
      %v1072 = vshrl.u32 %v1071, 7
      %v1073 = vsub.s32 0, %v1072
      %v1074 = vrot.slane %v1069, %v1073
      %v1075 = vlaneseq
      %v1076 = vshrl.u32 %v1075, 7
      %v1077 = vsub.s32 1, %v1076
      %v1078 = vrot.slane %v1069, %v1077
      %v1081 = vadd.f32 %v1065, %v1074
      %v1082 = vadd.f32 %v1066, %v1078
      %v1083 = vadd.f32 %v1067, %v1074
      %v1084 = vadd.f32 %v1068, %v1078
      %v1085 = vadd.f32 %v1081, %v1083
      %v1086 = vrot.slane %v1085, 4
      %v1087 = vadd.f32 %v1085, %v1086
      %v1088 = vrot.slane %v1087, 2
      %v1089 = vadd.f32 %v1087, %v1088
      %v1090 = vrot.slane %v1089, 1
      %v1091 = vadd.f32 %v1089, %v1090
      %v1092 = vadd.f32 %v1082, %v1084
      %v1093 = vrot.slane %v1092, 4
      %v1094 = vadd.f32 %v1092, %v1093
      %v1095 = vrot.slane %v1094, 2
      %v1096 = vadd.f32 %v1094, %v1095
      %v1097 = vrot.slane %v1096, 1
      %v1098 = vadd.f32 %v1096, %v1097
      %v1099 = vld [vmem:[%s6] sm:$0xf]
      %v1100 = vld [vmem:[%s6 + $0x4] sm:$0xf]
      %v1101 = vld [vmem:[%s6 + $0x8] sm:$0xf]
      %v1102 = vld [vmem:[%s6 + $0xc] sm:$0xf]
      %v1103 = vld [vmem:[%s6 + $0x10] sm:$0xf]
      %v1104 = vld [vmem:[%s6 + $0x14] sm:$0xf]
      %v1105 = vld [vmem:[%s6 + $0x18] sm:$0xf]
      %v1106 = vld [vmem:[%s6 + $0x1c] sm:$0xf]
      %v1107 = vld [vmem:[%s6 + $0x20] sm:$0xf]
      %v1108 = vld [vmem:[%s6 + $0x24] sm:$0xf]
      %v1109 = vld [vmem:[%s6 + $0x28] sm:$0xf]
      %v1110 = vld [vmem:[%s6 + $0x2c] sm:$0xf]
      %v1111 = vld [vmem:[%s6 + $0x30] sm:$0xf]
      %v1112 = vld [vmem:[%s6 + $0x34] sm:$0xf]
      %v1113 = vld [vmem:[%s6 + $0x38] sm:$0xf]
      %v1114 = vld [vmem:[%s6 + $0x3c] sm:$0xf]
      %v1115 = vld [vmem:[%s6 + $0x40] sm:$0xf]
      %v1116 = vld [vmem:[%s6 + $0x44] sm:$0xf]
      %v1117 = vld [vmem:[%s6 + $0x48] sm:$0xf]
      %v1118 = vld [vmem:[%s6 + $0x4c] sm:$0xf]
      %v1119 = vld [vmem:[%s6 + $0x50] sm:$0xf]
      %v1120 = vld [vmem:[%s6 + $0x54] sm:$0xf]
      %v1121 = vld [vmem:[%s6 + $0x58] sm:$0xf]
      %v1122 = vld [vmem:[%s6 + $0x5c] sm:$0xf]
      %v1123 = vld [vmem:[%s6 + $0x60] sm:$0xf]
      %v1124 = vld [vmem:[%s6 + $0x64] sm:$0xf]
      %v1125 = vld [vmem:[%s6 + $0x68] sm:$0xf]
      %v1126 = vld [vmem:[%s6 + $0x6c] sm:$0xf]
      %v1127 = vld [vmem:[%s6 + $0x70] sm:$0xf]
      %v1128 = vld [vmem:[%s6 + $0x74] sm:$0xf]
      %v1129 = vld [vmem:[%s6 + $0x78] sm:$0xf]
      %v1130 = vld [vmem:[%s6 + $0x7c] sm:$0xf]
      %v1131 = vunpack.c.l.bf16 %v1099
      %v1132 = vunpack.c.l.bf16 %v1100
      %v1133 = vunpack.c.l.bf16 %v1101
      %v1134 = vunpack.c.l.bf16 %v1102
      %v1135 = vunpack.c.l.bf16 %v1103
      %v1136 = vunpack.c.l.bf16 %v1104
      %v1137 = vunpack.c.l.bf16 %v1105
      %v1138 = vunpack.c.l.bf16 %v1106
      %v1139 = vunpack.c.l.bf16 %v1107
      %v1140 = vunpack.c.l.bf16 %v1108
      %v1141 = vunpack.c.l.bf16 %v1109
      %v1142 = vunpack.c.l.bf16 %v1110
      %v1143 = vunpack.c.l.bf16 %v1111
      %v1144 = vunpack.c.l.bf16 %v1112
      %v1145 = vunpack.c.l.bf16 %v1113
      %v1146 = vunpack.c.l.bf16 %v1114
      %v1147 = vunpack.c.l.bf16 %v1115
      %v1148 = vunpack.c.l.bf16 %v1116
      %v1149 = vunpack.c.l.bf16 %v1117
      %v1150 = vunpack.c.l.bf16 %v1118
      %v1151 = vunpack.c.l.bf16 %v1119
      %v1152 = vunpack.c.l.bf16 %v1120
      %v1153 = vunpack.c.l.bf16 %v1121
      %v1154 = vunpack.c.l.bf16 %v1122
      %v1155 = vunpack.c.l.bf16 %v1123
      %v1156 = vunpack.c.l.bf16 %v1124
      %v1157 = vunpack.c.l.bf16 %v1125
      %v1158 = vunpack.c.l.bf16 %v1126
      %v1159 = vunpack.c.l.bf16 %v1127
      %v1160 = vunpack.c.l.bf16 %v1128
      %v1161 = vunpack.c.l.bf16 %v1129
      %v1162 = vunpack.c.l.bf16 %v1130
      %1163 = vmatprep.subr.mxu0 0.0
      %1164 = vmatpush1.msra.mxu0 %v1131
      %1165 = vmatprep.subr.mxu0 0.0
      %1166 = vmatpush1.msra.mxu0 %v1132
      %1167 = vmatprep.subr.mxu0 0.0
      %1168 = vmatpush1.msra.mxu0 %v1133
      %1169 = vmatprep.subr.mxu0 0.0
      %1170 = vmatpush1.msra.mxu0 %v1134
      %1171 = vmatprep.subr.mxu0 0.0
      %1172 = vmatpush1.msra.mxu0 %v1135
      %1173 = vmatprep.subr.mxu0 0.0
      %1174 = vmatpush1.msra.mxu0 %v1136
      %1175 = vmatprep.subr.mxu0 0.0
      %1176 = vmatpush1.msra.mxu0 %v1137
      %1177 = vmatprep.subr.mxu0 0.0
      %1178 = vmatpush1.msra.mxu0 %v1138
      %1179 = vmatprep.subr.mxu0 0.0
      %1180 = vmatpush1.msra.mxu0 %v1139
      %1181 = vmatprep.subr.mxu0 0.0
      %1182 = vmatpush1.msra.mxu0 %v1140
      %1183 = vmatprep.subr.mxu0 0.0
      %1184 = vmatpush1.msra.mxu0 %v1141
      %1185 = vmatprep.subr.mxu0 0.0
      %1186 = vmatpush1.msra.mxu0 %v1142
      %1187 = vmatprep.subr.mxu0 0.0
      %1188 = vmatpush1.msra.mxu0 %v1143
      %1189 = vmatprep.subr.mxu0 0.0
      %1190 = vmatpush1.msra.mxu0 %v1144
      %1191 = vmatprep.subr.mxu0 0.0
      %1192 = vmatpush1.msra.mxu0 %v1145
      %1193 = vmatprep.subr.mxu0 0.0
      %1194 = vmatpush1.msra.mxu0 %v1146
      %1195 = vmatprep.subr.mxu0 0.0
      %1196 = vmatpush1.msra.mxu0 %v1147
      %1197 = vmatprep.subr.mxu0 0.0
      %1198 = vmatpush1.msra.mxu0 %v1148
      %1199 = vmatprep.subr.mxu0 0.0
      %1200 = vmatpush1.msra.mxu0 %v1149
      %1201 = vmatprep.subr.mxu0 0.0
      %1202 = vmatpush1.msra.mxu0 %v1150
      %1203 = vmatprep.subr.mxu0 0.0
      %1204 = vmatpush1.msra.mxu0 %v1151
      %1205 = vmatprep.subr.mxu0 0.0
      %1206 = vmatpush1.msra.mxu0 %v1152
      %1207 = vmatprep.subr.mxu0 0.0
      %1208 = vmatpush1.msra.mxu0 %v1153
      %1209 = vmatprep.subr.mxu0 0.0
      %1210 = vmatpush1.msra.mxu0 %v1154
      %1211 = vmatprep.subr.mxu0 0.0
      %1212 = vmatpush1.msra.mxu0 %v1155
      %1213 = vmatprep.subr.mxu0 0.0
      %1214 = vmatpush1.msra.mxu0 %v1156
      %1215 = vmatprep.subr.mxu0 0.0
      %1216 = vmatpush1.msra.mxu0 %v1157
      %1217 = vmatprep.subr.mxu0 0.0
      %1218 = vmatpush1.msra.mxu0 %v1158
      %1219 = vmatprep.subr.mxu0 0.0
      %1220 = vmatpush1.msra.mxu0 %v1159
      %1221 = vmatprep.subr.mxu0 0.0
      %1222 = vmatpush1.msra.mxu0 %v1160
      %1223 = vmatprep.subr.mxu0 0.0
      %1224 = vmatpush1.msra.mxu0 %v1161
      %1225 = vmatprep.subr.mxu0 0.0
      %1226 = vmatpush1.msra.mxu0 %v1162
      %1227 = vmatprep.mubr.f32.mxu0 %v1098
      %1228 = vmatmul.mubr.f32.gmra.mrb[0].mxu0 %v1091
      %v1229 = vpop.f32.mrb[0].mxu0
      %v1230 = vadd.f32 0.0, %v1229
      %v1231 = vpop.f32.mrb[0].mxu0
      %1232 = vdwg.mxu0
      %v1233 = vld [vmem:[%s7] sm:$0xff]
      %v1234 = vld [vmem:[%s7 + $0x8] sm:$0xff]
      %v1235 = vld [vmem:[%s8] sm:$0x1]
      %v1237 = vsel %vm603, %v1230, 0
      %1239 = vmatprep.subr.mxu0 0.0
      %1240 = vmatpush1.msra.mxu0 %v1233
      %1241 = vmatprep.subr.mxu0 0.0
      %1242 = vmatpush1.msra.mxu0 %v1234
      %1243 = vmatprep.subr.mxu0 0.0
      %1244 = vmatpush1.msra.mxu0 0.0
      %1245 = vmatprep.subr.mxu0 0.0
      %1246 = vmatpush1.msra.mxu0 0.0
      %1247 = vmatprep.subr.mxu0 0.0
      %1248 = vmatpush1.msra.mxu0 0.0
      %1249 = vmatprep.subr.mxu0 0.0
      %1250 = vmatpush1.msra.mxu0 0.0
      %1251 = vmatprep.subr.mxu0 0.0
      %1252 = vmatpush1.msra.mxu0 0.0
      %1253 = vmatprep.subr.mxu0 0.0
      %1254 = vmatpush1.msra.mxu0 0.0
      %1255 = vmatprep.subr.mxu0 0.0
      %1256 = vmatpush1.msra.mxu0 0.0
      %1257 = vmatprep.subr.mxu0 0.0
      %1258 = vmatpush1.msra.mxu0 0.0
      %1259 = vmatprep.subr.mxu0 0.0
      %1260 = vmatpush1.msra.mxu0 0.0
      %1261 = vmatprep.subr.mxu0 0.0
      %1262 = vmatpush1.msra.mxu0 0.0
      %1263 = vmatprep.subr.mxu0 0.0
      %1264 = vmatpush1.msra.mxu0 0.0
      %1265 = vmatprep.subr.mxu0 0.0
      %1266 = vmatpush1.msra.mxu0 0.0
      %1267 = vmatprep.subr.mxu0 0.0
      %1268 = vmatpush1.msra.mxu0 0.0
      %1269 = vmatprep.subr.mxu0 0.0
      %1270 = vmatpush1.msra.mxu0 0.0
      %1271 = vmatprep.subr.mxu0 0.0
      %1272 = vmatpush1.msra.mxu0 0.0
      %1273 = vmatprep.subr.mxu0 0.0
      %1274 = vmatpush1.msra.mxu0 0.0
      %1275 = vmatprep.subr.mxu0 0.0
      %1276 = vmatpush1.msra.mxu0 0.0
      %1277 = vmatprep.subr.mxu0 0.0
      %1278 = vmatpush1.msra.mxu0 0.0
      %1279 = vmatprep.subr.mxu0 0.0
      %1280 = vmatpush1.msra.mxu0 0.0
      %1281 = vmatprep.subr.mxu0 0.0
      %1282 = vmatpush1.msra.mxu0 0.0
      %1283 = vmatprep.subr.mxu0 0.0
      %1284 = vmatpush1.msra.mxu0 0.0
      %1285 = vmatprep.subr.mxu0 0.0
      %1286 = vmatpush1.msra.mxu0 0.0
      %1287 = vmatprep.subr.mxu0 0.0
      %1288 = vmatpush1.msra.mxu0 0.0
      %1289 = vmatprep.subr.mxu0 0.0
      %1290 = vmatpush1.msra.mxu0 0.0
      %1291 = vmatprep.subr.mxu0 0.0
      %1292 = vmatpush1.msra.mxu0 0.0
      %1293 = vmatprep.subr.mxu0 0.0
      %1294 = vmatpush1.msra.mxu0 0.0
      %1295 = vmatprep.subr.mxu0 0.0
      %1296 = vmatpush1.msra.mxu0 0.0
      %1297 = vmatprep.subr.mxu0 0.0
      %1298 = vmatpush1.msra.mxu0 0.0
      %1299 = vmatprep.subr.mxu0 0.0
      %1300 = vmatpush1.msra.mxu0 0.0
      %1301 = vmatprep.subr.mxu0 0.0
      %1302 = vmatpush1.msra.mxu0 0.0
      %1303 = vmatprep.mubr.f32.mxu0 0.0
      %1304 = vmatmul.mubr.f32.gmra.mrb[0].mxu0 %v1237
      %v1305 = vpop.f32.mrb[0].mxu0
      %v1306 = vadd.f32 %v1235, %v1305
      %v1307 = vpop.f32.mrb[0].mxu0
      %1308 = vdwg.mxu0
      %v1309 = vmax.f32 %v1306, 0.0
      %v1310 = vld [vmem:[%s9] sm:$0xff]
      %v1311 = vld [vmem:[%s9 + $0x8] sm:$0xff]
      %v1312 = vld [vmem:[%s10] sm:$0x3]
      %v1314 = vlaneseq
      %v1315 = vshrl.u32 %v1314, 7
      %v1316 = vsub.s32 0, %v1315
      %v1317 = vrot.slane %v1312, %v1316
      %v1318 = vlaneseq
      %v1319 = vshrl.u32 %v1318, 7
      %v1320 = vsub.s32 1, %v1319
      %v1321 = vrot.slane %v1312, %v1320
      %vm1324 = vcmask 64512
      %v1326 = vsel %vm1324, %v1309, 0
      %1328 = vmatprep.subr.mxu0 %v1311
      %1329 = vmatpush1.msra.mxu0 %v1310
      %1330 = vmatprep.subr.mxu0 0.0
      %1331 = vmatpush1.msra.mxu0 0.0
      %1332 = vmatprep.subr.mxu0 0.0
      %1333 = vmatpush1.msra.mxu0 0.0
      %1334 = vmatprep.subr.mxu0 0.0
      %1335 = vmatpush1.msra.mxu0 0.0
      %1336 = vmatprep.subr.mxu0 0.0
      %1337 = vmatpush1.msra.mxu0 0.0
      %1338 = vmatprep.subr.mxu0 0.0
      %1339 = vmatpush1.msra.mxu0 0.0
      %1340 = vmatprep.subr.mxu0 0.0
      %1341 = vmatpush1.msra.mxu0 0.0
      %1342 = vmatprep.subr.mxu0 0.0
      %1343 = vmatpush1.msra.mxu0 0.0
      %1344 = vmatprep.subr.mxu0 0.0
      %1345 = vmatpush1.msra.mxu0 0.0
      %1346 = vmatprep.subr.mxu0 0.0
      %1347 = vmatpush1.msra.mxu0 0.0
      %1348 = vmatprep.subr.mxu0 0.0
      %1349 = vmatpush1.msra.mxu0 0.0
      %1350 = vmatprep.subr.mxu0 0.0
      %1351 = vmatpush1.msra.mxu0 0.0
      %1352 = vmatprep.subr.mxu0 0.0
      %1353 = vmatpush1.msra.mxu0 0.0
      %1354 = vmatprep.subr.mxu0 0.0
      %1355 = vmatpush1.msra.mxu0 0.0
      %1356 = vmatprep.subr.mxu0 0.0
      %1357 = vmatpush1.msra.mxu0 0.0
      %1358 = vmatprep.subr.mxu0 0.0
      %1359 = vmatpush1.msra.mxu0 0.0
      %1360 = vmatprep.subr.mxu0 0.0
      %1361 = vmatpush1.msra.mxu0 0.0
      %1362 = vmatprep.subr.mxu0 0.0
      %1363 = vmatpush1.msra.mxu0 0.0
      %1364 = vmatprep.subr.mxu0 0.0
      %1365 = vmatpush1.msra.mxu0 0.0
      %1366 = vmatprep.subr.mxu0 0.0
      %1367 = vmatpush1.msra.mxu0 0.0
      %1368 = vmatprep.subr.mxu0 0.0
      %1369 = vmatpush1.msra.mxu0 0.0
      %1370 = vmatprep.subr.mxu0 0.0
      %1371 = vmatpush1.msra.mxu0 0.0
      %1372 = vmatprep.subr.mxu0 0.0
      %1373 = vmatpush1.msra.mxu0 0.0
      %1374 = vmatprep.subr.mxu0 0.0
      %1375 = vmatpush1.msra.mxu0 0.0
      %1376 = vmatprep.subr.mxu0 0.0
      %1377 = vmatpush1.msra.mxu0 0.0
      %1378 = vmatprep.subr.mxu0 0.0
      %1379 = vmatpush1.msra.mxu0 0.0
      %1380 = vmatprep.subr.mxu0 0.0
      %1381 = vmatpush1.msra.mxu0 0.0
      %1382 = vmatprep.subr.mxu0 0.0
      %1383 = vmatpush1.msra.mxu0 0.0
      %1384 = vmatprep.subr.mxu0 0.0
      %1385 = vmatpush1.msra.mxu0 0.0
      %1386 = vmatprep.subr.mxu0 0.0
      %1387 = vmatpush1.msra.mxu0 0.0
      %1388 = vmatprep.subr.mxu0 0.0
      %1389 = vmatpush1.msra.mxu0 0.0
      %1390 = vmatprep.subr.mxu0 0.0
      %1391 = vmatpush1.msra.mxu0 0.0
      %1392 = vmatprep.mubr.f32.mxu0 0.0
      %1393 = vmatmul.mubr.f32.gmra.mrb[0].mxu0 %v1326
      %v1394 = vpop.f32.mrb[0].mxu0
      %v1395 = vadd.f32 %v1317, %v1394
      %v1396 = vpop.f32.mrb[0].mxu0
      %v1397 = vadd.f32 %v1321, %v1396
      %1398 = vdwg.mxu0
      %v1399 = vadd.f32 %v1395, 3.0
      %v1400 = vadd.f32 %v1397, 3.0
      %v1401 = vmax.f32 %v1399, 0.0
      %v1402 = vmax.f32 %v1400, 0.0
      %v1403 = vmin.f32 %v1401, 6.0
      %v1404 = vmin.f32 %v1402, 6.0
      %v1405 = vmul.f32 %v1403, 0.16666667
      %v1406 = vmul.f32 %v1404, 0.16666667
      %v1407 = vlaneseq
      %v1408 = vshrl.u32 %v1407, 7
      %v1409 = vsub.s32 0, %v1408
      %v1410 = vrot.slane %v1405, %v1409
      %v1411 = vlaneseq
      %v1412 = vshrl.u32 %v1411, 7
      %v1413 = vsub.s32 0, %v1412
      %v1414 = vrot.slane %v1406, %v1413
      %v1415 = vmul.f32 %v1081, %v1410
      %v1416 = vmul.f32 %v1082, %v1414
      %v1417 = vmul.f32 %v1083, %v1410
      %v1418 = vmul.f32 %v1084, %v1414
      %v1419 = vadd.f32 %v1415, 3.0
      %v1420 = vadd.f32 %v1416, 3.0
      %v1421 = vadd.f32 %v1417, 3.0
      %v1422 = vadd.f32 %v1418, 3.0
      %v1423 = vmax.f32 %v1419, 0.0
      %v1424 = vmax.f32 %v1420, 0.0
      %v1425 = vmax.f32 %v1421, 0.0
      %v1426 = vmax.f32 %v1422, 0.0
      %v1427 = vmin.f32 %v1423, 6.0
      %v1428 = vmin.f32 %v1424, 6.0
      %v1429 = vmin.f32 %v1425, 6.0
      %v1430 = vmin.f32 %v1426, 6.0
      %v1431 = vmul.f32 %v1415, %v1427
      %v1432 = vmul.f32 %v1416, %v1428
      %v1433 = vmul.f32 %v1417, %v1429
      %v1434 = vmul.f32 %v1418, %v1430
      %v1435 = vmul.f32 %v1431, 0.16666667
      %v1436 = vmul.f32 %v1432, 0.16666667
      %v1437 = vmul.f32 %v1433, 0.16666667
      %v1438 = vmul.f32 %v1434, 0.16666667
      %v1439 = vld [vmem:[%s11] sm:$0xff]
      %v1440 = vld [vmem:[%s11 + $0x8] sm:$0xff]
      %v1441 = vld [vmem:[%s11 + $0x10] sm:$0xff]
      %v1442 = vld [vmem:[%s11 + $0x18] sm:$0xff]
      %v1443 = vld [vmem:[%s11 + $0x20] sm:$0xff]
      %v1444 = vld [vmem:[%s11 + $0x28] sm:$0xff]
      %v1445 = vld [vmem:[%s11 + $0x30] sm:$0xff]
      %v1446 = vld [vmem:[%s11 + $0x38] sm:$0xff]
      %v1447 = vld [vmem:[%s11 + $0x40] sm:$0xff]
      %v1448 = vld [vmem:[%s11 + $0x48] sm:$0xff]
      %v1449 = vld [vmem:[%s11 + $0x50] sm:$0xff]
      %v1450 = vld [vmem:[%s11 + $0x58] sm:$0xff]
      %v1451 = vld [vmem:[%s11 + $0x60] sm:$0xff]
      %v1452 = vld [vmem:[%s11 + $0x68] sm:$0xff]
      %v1453 = vld [vmem:[%s11 + $0x70] sm:$0xff]
      %v1454 = vld [vmem:[%s11 + $0x78] sm:$0xff]
      %v1455 = vld [vmem:[%s11 + $0x80] sm:$0xff]
      %v1456 = vld [vmem:[%s11 + $0x88] sm:$0xff]
      %v1457 = vld [vmem:[%s11 + $0x90] sm:$0xff]
      %v1458 = vld [vmem:[%s11 + $0x98] sm:$0xff]
      %v1459 = vld [vmem:[%s11 + $0xa0] sm:$0xff]
      %v1460 = vld [vmem:[%s11 + $0xa8] sm:$0xff]
      %v1461 = vld [vmem:[%s11 + $0xb0] sm:$0xff]
      %v1462 = vld [vmem:[%s11 + $0xb8] sm:$0xff]
      %v1463 = vld [vmem:[%s11 + $0xc0] sm:$0xff]
      %v1464 = vld [vmem:[%s11 + $0xc8] sm:$0xff]
      %v1465 = vld [vmem:[%s11 + $0xd0] sm:$0xff]
      %v1466 = vld [vmem:[%s11 + $0xd8] sm:$0xff]
      %v1467 = vld [vmem:[%s11 + $0xe0] sm:$0xff]
      %v1468 = vld [vmem:[%s11 + $0xe8] sm:$0xff]
      %v1469 = vld [vmem:[%s11 + $0xf0] sm:$0xff]
      %v1470 = vld [vmem:[%s11 + $0xf8] sm:$0xff]
      %v1471 = vld [vmem:[%s12] sm:$0x1]
      %v1473 = vlaneseq
      %v1474 = vshrl.u32 %v1473, 7
      %v1475 = vsub.s32 0, %v1474
      %v1476 = vrot.slane %v1471, %v1475
      %1478 = vmatprep.subr.mxu0 0.0
      %1479 = vmatpush1.msra.mxu0 %v1439
      %1480 = vmatprep.subr.mxu0 0.0
      %1481 = vmatpush1.msra.mxu0 %v1440
      %1482 = vmatprep.subr.mxu0 0.0
      %1483 = vmatpush1.msra.mxu0 %v1441
      %1484 = vmatprep.subr.mxu0 0.0
      %1485 = vmatpush1.msra.mxu0 %v1442
      %1486 = vmatprep.subr.mxu0 0.0
      %1487 = vmatpush1.msra.mxu0 %v1443
      %1488 = vmatprep.subr.mxu0 0.0
      %1489 = vmatpush1.msra.mxu0 %v1444
      %1490 = vmatprep.subr.mxu0 0.0
      %1491 = vmatpush1.msra.mxu0 %v1445
      %1492 = vmatprep.subr.mxu0 0.0
      %1493 = vmatpush1.msra.mxu0 %v1446
      %1494 = vmatprep.subr.mxu0 0.0
      %1495 = vmatpush1.msra.mxu0 %v1447
      %1496 = vmatprep.subr.mxu0 0.0
      %1497 = vmatpush1.msra.mxu0 %v1448
      %1498 = vmatprep.subr.mxu0 0.0
      %1499 = vmatpush1.msra.mxu0 %v1449
      %1500 = vmatprep.subr.mxu0 0.0
      %1501 = vmatpush1.msra.mxu0 %v1450
      %1502 = vmatprep.subr.mxu0 0.0
      %1503 = vmatpush1.msra.mxu0 %v1451
      %1504 = vmatprep.subr.mxu0 0.0
      %1505 = vmatpush1.msra.mxu0 %v1452
      %1506 = vmatprep.subr.mxu0 0.0
      %1507 = vmatpush1.msra.mxu0 %v1453
      %1508 = vmatprep.subr.mxu0 0.0
      %1509 = vmatpush1.msra.mxu0 %v1454
      %1510 = vmatprep.subr.mxu0 0.0
      %1511 = vmatpush1.msra.mxu0 %v1455
      %1512 = vmatprep.subr.mxu0 0.0
      %1513 = vmatpush1.msra.mxu0 %v1456
      %1514 = vmatprep.subr.mxu0 0.0
      %1515 = vmatpush1.msra.mxu0 %v1457
      %1516 = vmatprep.subr.mxu0 0.0
      %1517 = vmatpush1.msra.mxu0 %v1458
      %1518 = vmatprep.subr.mxu0 0.0
      %1519 = vmatpush1.msra.mxu0 %v1459
      %1520 = vmatprep.subr.mxu0 0.0
      %1521 = vmatpush1.msra.mxu0 %v1460
      %1522 = vmatprep.subr.mxu0 0.0
      %1523 = vmatpush1.msra.mxu0 %v1461
      %1524 = vmatprep.subr.mxu0 0.0
      %1525 = vmatpush1.msra.mxu0 %v1462
      %1526 = vmatprep.subr.mxu0 0.0
      %1527 = vmatpush1.msra.mxu0 %v1463
      %1528 = vmatprep.subr.mxu0 0.0
      %1529 = vmatpush1.msra.mxu0 %v1464
      %1530 = vmatprep.subr.mxu0 0.0
      %1531 = vmatpush1.msra.mxu0 %v1465
      %1532 = vmatprep.subr.mxu0 0.0
      %1533 = vmatpush1.msra.mxu0 %v1466
      %1534 = vmatprep.subr.mxu0 0.0
      %1535 = vmatpush1.msra.mxu0 %v1467
      %1536 = vmatprep.subr.mxu0 0.0
      %1537 = vmatpush1.msra.mxu0 %v1468
      %1538 = vmatprep.subr.mxu0 0.0
      %1539 = vmatpush1.msra.mxu0 %v1469
      %1540 = vmatprep.subr.mxu0 0.0
      %1541 = vmatpush1.msra.mxu0 %v1470
      %1542 = vmatprep.mubr.f32.mxu0 %v1436
      %1543 = vmatmul.mubr.f32.gmra.mrb[0].mxu0 %v1435
      %v1544 = vpop.f32.mrb[0].mxu0
      %v1545 = vadd.f32 %v1476, %v1544
      %v1546 = vpop.f32.mrb[0].mxu0
      %1547 = vmatprep.mubr.f32.mxu0 %v1438
      %1548 = vmatmul.mubr.f32.gmra.mrb[0].mxu0 %v1437
      %v1549 = vpop.f32.mrb[0].mxu0
      %v1550 = vadd.f32 %v1476, %v1549
      %v1551 = vpop.f32.mrb[0].mxu0
      %1552 = vdwg.mxu0
      %v1553 = vadd.f32 %v1545, %v444
      %v1554 = vadd.f32 %v1550, %v445
      %1555 = vst [vmem:[%s442] sm:$0xff] %v1553
      %1556 = vst [vmem:[%s442 + $0x8] sm:$0xff] %v1554
      %s1557 = smul.u32 2, %s24
      %p1558 = scmp.lt.s32.totalorder %s1557, 3
      %s1559 = scalar_select %p1558, %s1557, 3
      %s1560 = smul.addr %s1559, 8
      %s1561 = scalar_lea.vmem %s13, %s1560
      // Predicated region
      $region73: #{run_pallas.1} parent=71 // pred_check
        %p1562 = pneg %p320
      $region74: #{run_pallas.1} parent=71 // pred_check_branch
        %1564 = sbr.rel (%p1562) target = $region76
      $region75: #{run_pallas.1} parent=71 // pred_region
        %s1565 = smul.u32 2, %s24
      $region76: #{run_pallas.1} parent=71 // pred_fallthru
        _
    $region72: #{run_pallas.1} parent=5 // pred_fallthru
      _
    %p1566 = scmp.le.s32.totalorder 2, %s19
    // Predicated region
    $region77: #{run_pallas.1} parent=5 // pred_check
      %p1567 = pneg %p1566
    $region78: #{run_pallas.1} parent=5 // pred_check_branch
      %1569 = sbr.rel (%p1567) target = $region80
    $region79: #{run_pallas.1} parent=5 // pred_region
      %s1570 = ssub.s32 %s19, 2
      // Predicated region
      $region81: #{run_pallas.1} parent=79 // pred_check
        %p1571 = pneg %p326
      $region82: #{run_pallas.1} parent=79 // pred_check_branch
        %1573 = sbr.rel (%p1571) target = $region84
      $region83: #{run_pallas.1} parent=79 // pred_region
        %s1574 = smul.u32 2, %s25
        %p1575 = scmp.lt.s32.totalorder %s1574, 3
        %s1576 = scalar_select %p1575, %s1574, 3
        %s1577 = smul.addr %s1576, 8
        %s1578 = scalar_lea.vmem %s13, %s1577
      $region84: #{run_pallas.1} parent=79 // pred_fallthru
        _
    $region80: #{run_pallas.1} parent=5 // pred_fallthru
      _
  $region6: #{run_pallas.1} parent=0 // loop_footer
    %s23 = sadd.s32 1, %s19
  $region7: #{run_pallas.1} parent=0 // loop_footer_branch
    %18 = sbr.rel target = $region3
  $region8: #{run_pallas.1} parent=0 // loop_exit
    _

</llo_original>
